<compile_context>
chip_gen: v7x
topology: tpu7x:2x2x1
jax: 0.10.0
libtpu: 0.0.40
codegen_flags: <defaults>
</compile_context>

<pallas_src>
import functools

import jax
import jax.numpy as jnp
from jax.experimental import pallas as pl
from jax.experimental.pallas import tpu as pltpu


def _vtm_attn_kernel(x_ref, wq_ref, wk_ref, wv_ref, wp_ref, bp_ref,
                     y_ref, attn_ref, ctx_ref, *, tb, n, c, hd, nh):
    """One grid step = one batch tile; all heads handled in-body.

    x_ref    : (TB*N, C)      input slab (host pre-flattened)
    wq/wk/wv : (C, C)         full projection weights, resident (scale in Wq)
    wp_ref   : (C, C)         output projection, resident
    bp_ref   : (1, C)         output projection bias
    y_ref    : (TB*N, C)      output slab
    attn_ref : (TB, H, N, N)  softmax probabilities
    ctx_ref  : (TB, N, C)     VMEM scratch gathering per-head context
    """
    x2 = x_ref[...]                                                    # (TB*N, C)

    # Full-width projections: MXU output width = C (not head_dim).
    q_all = jnp.dot(x2, wq_ref[...], preferred_element_type=jnp.float32)
    k_all = jnp.dot(x2, wk_ref[...], preferred_element_type=jnp.float32)
    v_all = jnp.dot(x2, wv_ref[...], preferred_element_type=jnp.float32)

    q3 = q_all.reshape(tb, n, c)
    k3 = k_all.reshape(tb, n, c)
    v3 = v_all.reshape(tb, n, c)

    # Per-head attention; static unroll, static lane slices of resident slabs.
    for h in range(nh):
        lo = h * hd
        q = q3[:, :, lo:lo + hd]                                       # (TB, N, hd)
        k = k3[:, :, lo:lo + hd]
        v = v3[:, :, lo:lo + hd]

        # Scores: contract on the feature dim of both operands (no explicit k.T).
        s = jnp.einsum("bqd,bkd->bqk", q, k,
                       preferred_element_type=jnp.float32)             # (TB, N, N)
        s = s - jnp.max(s, axis=-1, keepdims=True)
        e = jnp.exp(s)
        p = e * pl.reciprocal(jnp.sum(e, axis=-1, keepdims=True), approx=False)

        attn_ref[:, h, :, :] = p                                       # N-wide store

        ctx_ref[:, :, lo:lo + hd] = jnp.einsum(
            "bqk,bkd->bqd", p, v, preferred_element_type=jnp.float32)  # (TB, N, hd)

    # Single full-width output projection + bias per batch tile.
    y_ref[...] = (jnp.dot(ctx_ref[...].reshape(tb * n, c), wp_ref[...],
                          preferred_element_type=jnp.float32)
                  + bp_ref[...])


def _vmem_block_bytes(tb, n, c, h):
    """Per-batch-tile VMEM estimate including in-kernel temporaries (f32)."""
    f = 4
    io_blocks = 2 * f * (2 * tb * n * c + tb * h * n * n)   # double-buffered x, y, attn
    scratch = f * tb * n * c                                 # ctx scratch
    temps = f * tb * n * (3 * c + 4 * n)                     # q/k/v slabs + s/e/p live vals
    return io_blocks + scratch + temps


def _pick_batch_tile(B, N, C, H, vmem_budget):
    """Largest valid divisor of B; prefer >= 2 grid steps (megacore on v7x)."""
    def ok(tb):
        return (B % tb == 0
                and tb * N <= 4096
                and ((tb * N) % 8 == 0 or tb == B)   # sublane-aligned x/y blocks
                and _vmem_block_bytes(tb, N, C, H) <= vmem_budget)

    candidates = [tb for tb in range(1, B + 1) if ok(tb)]
    if not candidates:
        return 1
    small = [tb for tb in candidates if B // tb >= 2]   # keep both v7x TCs busy
    return max(small) if small else max(candidates)


def vtm_attn(x, wq, wk, wv, wp, bp, *, num_heads):
    """x: (B, N, C) float32.  Weights (C, C) in (in, out) layout, bp: (C,).

    Returns (y, attn): y (B, N, C), attn (B, H, N, N) softmax probabilities.
    Self-attention (kv=None) path, eval mode (dropouts are identity).
    """
    B, N, C = x.shape
    H = num_heads
    assert C % H == 0
    hd = C // H
    scale = float(hd) ** (-0.5)

    # Generation-aware VMEM capacity (v5e/v6e: 128 MiB, v7x: 64 MiB).
    try:
        vmem_cap = int(pltpu.get_tpu_info().vmem_capacity_bytes)
    except Exception:
        vmem_cap = 64 * 1024 * 1024   # conservative (v7x) fallback

    weight_bytes = 4 * (4 * C * C + C)          # Wq/Wk/Wv/Wp + bias, f32
    budget = int(0.6 * vmem_cap) - 2 * weight_bytes
    TB = _pick_batch_tile(B, N, C, H, budget)

    # Host-side prep: flatten x to a (B*N, C) slab (no in-kernel axis merge)
    # and fold the softmax scale into Wq (removes a per-step VPU multiply).
    x2 = x.reshape(B * N, C)
    wq_s = (wq * scale).astype(jnp.float32)

    kernel = functools.partial(_vtm_attn_kernel, tb=TB, n=N, c=C, hd=hd, nh=H)

    grid_spec = pltpu.PrefetchScalarGridSpec(
        num_scalar_prefetch=0,
        grid=(B // TB,),
        in_specs=[
            pl.BlockSpec((TB * N, C), lambda b: (b, 0)),      # x slab (per batch tile)
            pl.BlockSpec((C, C), lambda b: (0, 0)),           # Wq (resident, pre-scaled)
            pl.BlockSpec((C, C), lambda b: (0, 0)),           # Wk (resident)
            pl.BlockSpec((C, C), lambda b: (0, 0)),           # Wv (resident)
            pl.BlockSpec((C, C), lambda b: (0, 0)),           # Wproj (resident)
            pl.BlockSpec((1, C), lambda b: (0, 0)),           # bproj
        ],
        out_specs=[
            pl.BlockSpec((TB * N, C), lambda b: (b, 0)),             # y slab
            pl.BlockSpec((TB, H, N, N), lambda b: (b, 0, 0, 0)),     # attn (N-wide)
        ],
        scratch_shapes=[pltpu.VMEM((TB, N, C), jnp.float32)],        # per-tile context
    )

    vmem_limit = max(
        32 * 1024 * 1024,
        min(int(0.9 * vmem_cap),
            2 * weight_bytes + _vmem_block_bytes(TB, N, C, H) + (8 << 20)))

    y2, attn = pl.pallas_call(
        kernel,
        grid_spec=grid_spec,
        out_shape=(
            jax.ShapeDtypeStruct((B * N, C), jnp.float32),
            jax.ShapeDtypeStruct((B, H, N, N), jnp.float32),
        ),
        compiler_params=pltpu.CompilerParams(
            dimension_semantics=("parallel",),
            vmem_limit_bytes=vmem_limit,
        ),
    )(x2, wq_s, wk, wv, wp, bp.reshape(1, C))

    return y2.reshape(B, N, C), attn


def _reference(x, wq, wk, wv, wp, bp, num_heads):
    """Pure-JAX reference mirroring the PyTorch forward (eval mode)."""
    B, N, C = x.shape
    hd = C // num_heads
    scale = hd ** (-0.5)

    def split_heads(t):
        return t.reshape(B, N, num_heads, hd).transpose(0, 2, 1, 3)  # (B,H,N,hd)

    q = split_heads(x @ wq)
    k = split_heads(x @ wk)
    v = split_heads(x @ wv)
    attn = jnp.einsum("bhqd,bhkd->bhqk", q, k) * scale
    attn = jax.nn.softmax(attn, axis=-1)
    ctx = jnp.einsum("bhqk,bhkd->bhqd", attn, v)
    ctx = ctx.transpose(0, 2, 1, 3).reshape(B, N, C)
    y = ctx @ wp + bp
    return y, attn[:, :, :, :N]


if __name__ == "__main__":
    B, N, C = 2, 8, 32
    num_heads = 8  # head_dim = 4

    key = jax.random.PRNGKey(0)
    kx, kq, kk, kvk, kp, kb = jax.random.split(key, 6)

    x = jax.random.normal(kx, (B, N, C), dtype=jnp.float32)
    # nn.Linear weights, stored pre-transposed as (in, out).
    wq = jax.random.normal(kq, (C, C), dtype=jnp.float32) * 0.05
    wk = jax.random.normal(kk, (C, C), dtype=jnp.float32) * 0.05
    wv = jax.random.normal(kvk, (C, C), dtype=jnp.float32) * 0.05
    wp = jax.random.normal(kp, (C, C), dtype=jnp.float32) * 0.05
    bp = jax.random.normal(kb, (C,), dtype=jnp.float32) * 0.05

    y, attn = vtm_attn(x, wq, wk, wv, wp, bp, num_heads=num_heads)
    jax.block_until_ready((y, attn))

    y_ref, attn_ref = _reference(x, wq, wk, wv, wp, bp, num_heads)
    assert y.shape == (B, N, C) and attn.shape == (B, num_heads, N, N)
    assert jnp.allclose(y, y_ref, atol=2e-4, rtol=1e-4), "output mismatch"
    assert jnp.allclose(attn, attn_ref, atol=2e-5, rtol=1e-4), "attn mismatch"

    print("KERNEL_OK")
</pallas_src>

<mosaic_0001>
module attributes {stable_mosaic.version = 11 : i64} {
  func.func @_vtm_attn_kernel(%arg0: i32, %arg1: memref<8x32xf32, #tpu.memory_space<vmem>>, %arg2: memref<32x32xf32, #tpu.memory_space<vmem>>, %arg3: memref<32x32xf32, #tpu.memory_space<vmem>>, %arg4: memref<32x32xf32, #tpu.memory_space<vmem>>, %arg5: memref<32x32xf32, #tpu.memory_space<vmem>>, %arg6: memref<1x32xf32, #tpu.memory_space<vmem>>, %arg7: memref<8x32xf32, #tpu.memory_space<vmem>>, %arg8: memref<1x8x8x8xf32, #tpu.memory_space<vmem>>, %arg9: memref<1x8x32xf32, #tpu.memory_space<vmem>>) attributes {dimension_semantics = [#tpu.dimension_semantics<parallel>], iteration_bounds = array<i64: 2>, scalar_prefetch = 0 : i64, scratch_operands = 1 : i64, tpu.core_type = #tpu.core_type<tc>, window_params = [{transform_indices = @transform_0, window_bounds = array<i64: 8, 32>}, {pipeline_mode = #tpu.pipeline_mode<synchronous>, transform_indices = @transform_1, window_bounds = array<i64: 32, 32>}, {pipeline_mode = #tpu.pipeline_mode<synchronous>, transform_indices = @transform_2, window_bounds = array<i64: 32, 32>}, {pipeline_mode = #tpu.pipeline_mode<synchronous>, transform_indices = @transform_3, window_bounds = array<i64: 32, 32>}, {pipeline_mode = #tpu.pipeline_mode<synchronous>, transform_indices = @transform_4, window_bounds = array<i64: 32, 32>}, {pipeline_mode = #tpu.pipeline_mode<synchronous>, transform_indices = @transform_5, window_bounds = array<i64: 1, 32>}, {transform_indices = @transform_6, window_bounds = array<i64: 8, 32>}, {transform_indices = @transform_7, window_bounds = array<i64: 1, 8, 8, 8>}]} {
    %c0 = arith.constant 0 : index
    %c0_0 = arith.constant 0 : index
    %0 = vector.load %arg1[%c0, %c0_0] : memref<8x32xf32, #tpu.memory_space<vmem>>, vector<8x32xf32>
    %c0_1 = arith.constant 0 : index
    %c0_2 = arith.constant 0 : index
    %1 = vector.load %arg2[%c0_1, %c0_2] : memref<32x32xf32, #tpu.memory_space<vmem>>, vector<32x32xf32>
    %cst = arith.constant dense<0.000000e+00> : vector<8x32xf32>
    %2 = tpu.matmul %0, %1, %cst {dimension_numbers = #tpu.dot_dimension_numbers<[1], [0], [0], [1], [0, 0, 1, 1], [], []>} : vector<8x32xf32>, vector<32x32xf32>, vector<8x32xf32> -> vector<8x32xf32>
    %c0_3 = arith.constant 0 : index
    %c0_4 = arith.constant 0 : index
    %3 = vector.load %arg3[%c0_3, %c0_4] : memref<32x32xf32, #tpu.memory_space<vmem>>, vector<32x32xf32>
    %cst_5 = arith.constant dense<0.000000e+00> : vector<8x32xf32>
    %4 = tpu.matmul %0, %3, %cst_5 {dimension_numbers = #tpu.dot_dimension_numbers<[1], [0], [0], [1], [0, 0, 1, 1], [], []>} : vector<8x32xf32>, vector<32x32xf32>, vector<8x32xf32> -> vector<8x32xf32>
    %c0_6 = arith.constant 0 : index
    %c0_7 = arith.constant 0 : index
    %5 = vector.load %arg4[%c0_6, %c0_7] : memref<32x32xf32, #tpu.memory_space<vmem>>, vector<32x32xf32>
    %cst_8 = arith.constant dense<0.000000e+00> : vector<8x32xf32>
    %6 = tpu.matmul %0, %5, %cst_8 {dimension_numbers = #tpu.dot_dimension_numbers<[1], [0], [0], [1], [0, 0, 1, 1], [], []>} : vector<8x32xf32>, vector<32x32xf32>, vector<8x32xf32> -> vector<8x32xf32>
    %7 = vector.shape_cast %2 : vector<8x32xf32> to vector<1x8x32xf32>
    %8 = vector.shape_cast %4 : vector<8x32xf32> to vector<1x8x32xf32>
    %9 = vector.shape_cast %6 : vector<8x32xf32> to vector<1x8x32xf32>
    %10 = vector.extract_strided_slice %7 {offsets = [0, 0, 0], sizes = [1, 8, 4], strides = [1, 1, 1]} : vector<1x8x32xf32> to vector<1x8x4xf32>
    %11 = vector.extract_strided_slice %8 {offsets = [0, 0, 0], sizes = [1, 8, 4], strides = [1, 1, 1]} : vector<1x8x32xf32> to vector<1x8x4xf32>
    %12 = vector.extract_strided_slice %9 {offsets = [0, 0, 0], sizes = [1, 8, 4], strides = [1, 1, 1]} : vector<1x8x32xf32> to vector<1x8x4xf32>
    "tpu.trace_start"() <{level = 10 : i32, message = "bqd,bkd->bqk"}> : () -> ()
    %cst_9 = arith.constant dense<0.000000e+00> : vector<1x8x8xf32>
    %13 = tpu.matmul %10, %11, %cst_9 {dimension_numbers = #tpu.dot_dimension_numbers<[2], [2], [1], [1], [0, 0, 0, 1, 1, 1], [0], [0]>} : vector<1x8x4xf32>, vector<1x8x4xf32>, vector<1x8x8xf32> -> vector<1x8x8xf32>
    "tpu.trace_stop"() : () -> ()
    %cst_10 = arith.constant dense<0xFF800000> : vector<1x8xf32>
    %14 = vector.multi_reduction <maximumf>, %13, %cst_10 [2] : vector<1x8x8xf32> to vector<1x8xf32>
    %15 = vector.shape_cast %14 : vector<1x8xf32> to vector<1x8x1xf32>
    %16 = vector.broadcast %15 : vector<1x8x1xf32> to vector<1x8x8xf32>
    %17 = arith.subf %13, %16 : vector<1x8x8xf32>
    %18 = math.exp %17 : vector<1x8x8xf32>
    %cst_11 = arith.constant dense<0.000000e+00> : vector<1x8xf32>
    %19 = vector.multi_reduction <add>, %18, %cst_11 [2] : vector<1x8x8xf32> to vector<1x8xf32>
    %20 = vector.shape_cast %19 : vector<1x8xf32> to vector<1x8x1xf32>
    %21 = tpu.reciprocal %20 : vector<1x8x1xf32> -> vector<1x8x1xf32>
    %22 = vector.broadcast %21 : vector<1x8x1xf32> to vector<1x8x8xf32>
    %23 = arith.mulf %18, %22 : vector<1x8x8xf32>
    %c0_12 = arith.constant 0 : index
    %c0_13 = arith.constant 0 : index
    %c0_14 = arith.constant 0 : index
    %c0_15 = arith.constant 0 : index
    %24 = vector.load %arg8[%c0_12, %c0_13, %c0_14, %c0_15] : memref<1x8x8x8xf32, #tpu.memory_space<vmem>>, vector<1x1x8x8xf32>
    %25 = vector.shape_cast %24 : vector<1x1x8x8xf32> to vector<1x8x8xf32>
    %26 = vector.shape_cast %23 : vector<1x8x8xf32> to vector<1x1x8x8xf32>
    tpu.vector_store %arg8[%c0_12, %c0_13, %c0_14, %c0_15], %26 {strides = array<i32>} : memref<1x8x8x8xf32, #tpu.memory_space<vmem>>, vector<1x1x8x8xf32>,
    "tpu.trace_start"() <{level = 10 : i32, message = "bqk,bkd->bqd"}> : () -> ()
    %cst_16 = arith.constant dense<0.000000e+00> : vector<1x8x4xf32>
    %27 = tpu.matmul %23, %12, %cst_16 {dimension_numbers = #tpu.dot_dimension_numbers<[2], [1], [1], [2], [0, 0, 0, 1, 1, 2], [0], [0]>} : vector<1x8x8xf32>, vector<1x8x4xf32>, vector<1x8x4xf32> -> vector<1x8x4xf32>
    "tpu.trace_stop"() : () -> ()
    %c0_17 = arith.constant 0 : index
    %c0_18 = arith.constant 0 : index
    %c0_19 = arith.constant 0 : index
    %28 = vector.load %arg9[%c0_17, %c0_18, %c0_19] : memref<1x8x32xf32, #tpu.memory_space<vmem>>, vector<1x8x4xf32>
    tpu.vector_store %arg9[%c0_17, %c0_18, %c0_19], %27 {strides = array<i32>} : memref<1x8x32xf32, #tpu.memory_space<vmem>>, vector<1x8x4xf32>,
    %29 = vector.extract_strided_slice %7 {offsets = [0, 0, 4], sizes = [1, 8, 4], strides = [1, 1, 1]} : vector<1x8x32xf32> to vector<1x8x4xf32>
    %30 = vector.extract_strided_slice %8 {offsets = [0, 0, 4], sizes = [1, 8, 4], strides = [1, 1, 1]} : vector<1x8x32xf32> to vector<1x8x4xf32>
    %31 = vector.extract_strided_slice %9 {offsets = [0, 0, 4], sizes = [1, 8, 4], strides = [1, 1, 1]} : vector<1x8x32xf32> to vector<1x8x4xf32>
    "tpu.trace_start"() <{level = 10 : i32, message = "bqd,bkd->bqk"}> : () -> ()
    %cst_20 = arith.constant dense<0.000000e+00> : vector<1x8x8xf32>
    %32 = tpu.matmul %29, %30, %cst_20 {dimension_numbers = #tpu.dot_dimension_numbers<[2], [2], [1], [1], [0, 0, 0, 1, 1, 1], [0], [0]>} : vector<1x8x4xf32>, vector<1x8x4xf32>, vector<1x8x8xf32> -> vector<1x8x8xf32>
    "tpu.trace_stop"() : () -> ()
    %cst_21 = arith.constant dense<0xFF800000> : vector<1x8xf32>
    %33 = vector.multi_reduction <maximumf>, %32, %cst_21 [2] : vector<1x8x8xf32> to vector<1x8xf32>
    %34 = vector.shape_cast %33 : vector<1x8xf32> to vector<1x8x1xf32>
    %35 = vector.broadcast %34 : vector<1x8x1xf32> to vector<1x8x8xf32>
    %36 = arith.subf %32, %35 : vector<1x8x8xf32>
    %37 = math.exp %36 : vector<1x8x8xf32>
    %cst_22 = arith.constant dense<0.000000e+00> : vector<1x8xf32>
    %38 = vector.multi_reduction <add>, %37, %cst_22 [2] : vector<1x8x8xf32> to vector<1x8xf32>
    %39 = vector.shape_cast %38 : vector<1x8xf32> to vector<1x8x1xf32>
    %40 = tpu.reciprocal %39 : vector<1x8x1xf32> -> vector<1x8x1xf32>
    %41 = vector.broadcast %40 : vector<1x8x1xf32> to vector<1x8x8xf32>
    %42 = arith.mulf %37, %41 : vector<1x8x8xf32>
    %c0_23 = arith.constant 0 : index
    %c1 = arith.constant 1 : index
    %c0_24 = arith.constant 0 : index
    %c0_25 = arith.constant 0 : index
    %43 = vector.load %arg8[%c0_23, %c1, %c0_24, %c0_25] : memref<1x8x8x8xf32, #tpu.memory_space<vmem>>, vector<1x1x8x8xf32>
    %44 = vector.shape_cast %43 : vector<1x1x8x8xf32> to vector<1x8x8xf32>
    %45 = vector.shape_cast %42 : vector<1x8x8xf32> to vector<1x1x8x8xf32>
    tpu.vector_store %arg8[%c0_23, %c1, %c0_24, %c0_25], %45 {strides = array<i32>} : memref<1x8x8x8xf32, #tpu.memory_space<vmem>>, vector<1x1x8x8xf32>,
    "tpu.trace_start"() <{level = 10 : i32, message = "bqk,bkd->bqd"}> : () -> ()
    %cst_26 = arith.constant dense<0.000000e+00> : vector<1x8x4xf32>
    %46 = tpu.matmul %42, %31, %cst_26 {dimension_numbers = #tpu.dot_dimension_numbers<[2], [1], [1], [2], [0, 0, 0, 1, 1, 2], [0], [0]>} : vector<1x8x8xf32>, vector<1x8x4xf32>, vector<1x8x4xf32> -> vector<1x8x4xf32>
    "tpu.trace_stop"() : () -> ()
    %c0_27 = arith.constant 0 : index
    %c0_28 = arith.constant 0 : index
    %c4 = arith.constant 4 : index
    %47 = vector.load %arg9[%c0_27, %c0_28, %c4] : memref<1x8x32xf32, #tpu.memory_space<vmem>>, vector<1x8x4xf32>
    tpu.vector_store %arg9[%c0_27, %c0_28, %c4], %46 {strides = array<i32>} : memref<1x8x32xf32, #tpu.memory_space<vmem>>, vector<1x8x4xf32>,
    %48 = vector.extract_strided_slice %7 {offsets = [0, 0, 8], sizes = [1, 8, 4], strides = [1, 1, 1]} : vector<1x8x32xf32> to vector<1x8x4xf32>
    %49 = vector.extract_strided_slice %8 {offsets = [0, 0, 8], sizes = [1, 8, 4], strides = [1, 1, 1]} : vector<1x8x32xf32> to vector<1x8x4xf32>
    %50 = vector.extract_strided_slice %9 {offsets = [0, 0, 8], sizes = [1, 8, 4], strides = [1, 1, 1]} : vector<1x8x32xf32> to vector<1x8x4xf32>
    "tpu.trace_start"() <{level = 10 : i32, message = "bqd,bkd->bqk"}> : () -> ()
    %cst_29 = arith.constant dense<0.000000e+00> : vector<1x8x8xf32>
    %51 = tpu.matmul %48, %49, %cst_29 {dimension_numbers = #tpu.dot_dimension_numbers<[2], [2], [1], [1], [0, 0, 0, 1, 1, 1], [0], [0]>} : vector<1x8x4xf32>, vector<1x8x4xf32>, vector<1x8x8xf32> -> vector<1x8x8xf32>
    "tpu.trace_stop"() : () -> ()
    %cst_30 = arith.constant dense<0xFF800000> : vector<1x8xf32>
    %52 = vector.multi_reduction <maximumf>, %51, %cst_30 [2] : vector<1x8x8xf32> to vector<1x8xf32>
    %53 = vector.shape_cast %52 : vector<1x8xf32> to vector<1x8x1xf32>
    %54 = vector.broadcast %53 : vector<1x8x1xf32> to vector<1x8x8xf32>
    %55 = arith.subf %51, %54 : vector<1x8x8xf32>
    %56 = math.exp %55 : vector<1x8x8xf32>
    %cst_31 = arith.constant dense<0.000000e+00> : vector<1x8xf32>
    %57 = vector.multi_reduction <add>, %56, %cst_31 [2] : vector<1x8x8xf32> to vector<1x8xf32>
    %58 = vector.shape_cast %57 : vector<1x8xf32> to vector<1x8x1xf32>
    %59 = tpu.reciprocal %58 : vector<1x8x1xf32> -> vector<1x8x1xf32>
    %60 = vector.broadcast %59 : vector<1x8x1xf32> to vector<1x8x8xf32>
    %61 = arith.mulf %56, %60 : vector<1x8x8xf32>
    %c0_32 = arith.constant 0 : index
    %c2 = arith.constant 2 : index
    %c0_33 = arith.constant 0 : index
    %c0_34 = arith.constant 0 : index
    %62 = vector.load %arg8[%c0_32, %c2, %c0_33, %c0_34] : memref<1x8x8x8xf32, #tpu.memory_space<vmem>>, vector<1x1x8x8xf32>
    %63 = vector.shape_cast %62 : vector<1x1x8x8xf32> to vector<1x8x8xf32>
    %64 = vector.shape_cast %61 : vector<1x8x8xf32> to vector<1x1x8x8xf32>
    tpu.vector_store %arg8[%c0_32, %c2, %c0_33, %c0_34], %64 {strides = array<i32>} : memref<1x8x8x8xf32, #tpu.memory_space<vmem>>, vector<1x1x8x8xf32>,
    "tpu.trace_start"() <{level = 10 : i32, message = "bqk,bkd->bqd"}> : () -> ()
    %cst_35 = arith.constant dense<0.000000e+00> : vector<1x8x4xf32>
    %65 = tpu.matmul %61, %50, %cst_35 {dimension_numbers = #tpu.dot_dimension_numbers<[2], [1], [1], [2], [0, 0, 0, 1, 1, 2], [0], [0]>} : vector<1x8x8xf32>, vector<1x8x4xf32>, vector<1x8x4xf32> -> vector<1x8x4xf32>
    "tpu.trace_stop"() : () -> ()
    %c0_36 = arith.constant 0 : index
    %c0_37 = arith.constant 0 : index
    %c8 = arith.constant 8 : index
    %66 = vector.load %arg9[%c0_36, %c0_37, %c8] : memref<1x8x32xf32, #tpu.memory_space<vmem>>, vector<1x8x4xf32>
    tpu.vector_store %arg9[%c0_36, %c0_37, %c8], %65 {strides = array<i32>} : memref<1x8x32xf32, #tpu.memory_space<vmem>>, vector<1x8x4xf32>,
    %67 = vector.extract_strided_slice %7 {offsets = [0, 0, 12], sizes = [1, 8, 4], strides = [1, 1, 1]} : vector<1x8x32xf32> to vector<1x8x4xf32>
    %68 = vector.extract_strided_slice %8 {offsets = [0, 0, 12], sizes = [1, 8, 4], strides = [1, 1, 1]} : vector<1x8x32xf32> to vector<1x8x4xf32>
    %69 = vector.extract_strided_slice %9 {offsets = [0, 0, 12], sizes = [1, 8, 4], strides = [1, 1, 1]} : vector<1x8x32xf32> to vector<1x8x4xf32>
    "tpu.trace_start"() <{level = 10 : i32, message = "bqd,bkd->bqk"}> : () -> ()
    %cst_38 = arith.constant dense<0.000000e+00> : vector<1x8x8xf32>
    %70 = tpu.matmul %67, %68, %cst_38 {dimension_numbers = #tpu.dot_dimension_numbers<[2], [2], [1], [1], [0, 0, 0, 1, 1, 1], [0], [0]>} : vector<1x8x4xf32>, vector<1x8x4xf32>, vector<1x8x8xf32> -> vector<1x8x8xf32>
    "tpu.trace_stop"() : () -> ()
    %cst_39 = arith.constant dense<0xFF800000> : vector<1x8xf32>
    %71 = vector.multi_reduction <maximumf>, %70, %cst_39 [2] : vector<1x8x8xf32> to vector<1x8xf32>
    %72 = vector.shape_cast %71 : vector<1x8xf32> to vector<1x8x1xf32>
    %73 = vector.broadcast %72 : vector<1x8x1xf32> to vector<1x8x8xf32>
    %74 = arith.subf %70, %73 : vector<1x8x8xf32>
    %75 = math.exp %74 : vector<1x8x8xf32>
    %cst_40 = arith.constant dense<0.000000e+00> : vector<1x8xf32>
    %76 = vector.multi_reduction <add>, %75, %cst_40 [2] : vector<1x8x8xf32> to vector<1x8xf32>
    %77 = vector.shape_cast %76 : vector<1x8xf32> to vector<1x8x1xf32>
    %78 = tpu.reciprocal %77 : vector<1x8x1xf32> -> vector<1x8x1xf32>
    %79 = vector.broadcast %78 : vector<1x8x1xf32> to vector<1x8x8xf32>
    %80 = arith.mulf %75, %79 : vector<1x8x8xf32>
    %c0_41 = arith.constant 0 : index
    %c3 = arith.constant 3 : index
    %c0_42 = arith.constant 0 : index
    %c0_43 = arith.constant 0 : index
    %81 = vector.load %arg8[%c0_41, %c3, %c0_42, %c0_43] : memref<1x8x8x8xf32, #tpu.memory_space<vmem>>, vector<1x1x8x8xf32>
    %82 = vector.shape_cast %81 : vector<1x1x8x8xf32> to vector<1x8x8xf32>
    %83 = vector.shape_cast %80 : vector<1x8x8xf32> to vector<1x1x8x8xf32>
    tpu.vector_store %arg8[%c0_41, %c3, %c0_42, %c0_43], %83 {strides = array<i32>} : memref<1x8x8x8xf32, #tpu.memory_space<vmem>>, vector<1x1x8x8xf32>,
    "tpu.trace_start"() <{level = 10 : i32, message = "bqk,bkd->bqd"}> : () -> ()
    %cst_44 = arith.constant dense<0.000000e+00> : vector<1x8x4xf32>
    %84 = tpu.matmul %80, %69, %cst_44 {dimension_numbers = #tpu.dot_dimension_numbers<[2], [1], [1], [2], [0, 0, 0, 1, 1, 2], [0], [0]>} : vector<1x8x8xf32>, vector<1x8x4xf32>, vector<1x8x4xf32> -> vector<1x8x4xf32>
    "tpu.trace_stop"() : () -> ()
    %c0_45 = arith.constant 0 : index
    %c0_46 = arith.constant 0 : index
    %c12 = arith.constant 12 : index
    %85 = vector.load %arg9[%c0_45, %c0_46, %c12] : memref<1x8x32xf32, #tpu.memory_space<vmem>>, vector<1x8x4xf32>
    tpu.vector_store %arg9[%c0_45, %c0_46, %c12], %84 {strides = array<i32>} : memref<1x8x32xf32, #tpu.memory_space<vmem>>, vector<1x8x4xf32>,
    %86 = vector.extract_strided_slice %7 {offsets = [0, 0, 16], sizes = [1, 8, 4], strides = [1, 1, 1]} : vector<1x8x32xf32> to vector<1x8x4xf32>
    %87 = vector.extract_strided_slice %8 {offsets = [0, 0, 16], sizes = [1, 8, 4], strides = [1, 1, 1]} : vector<1x8x32xf32> to vector<1x8x4xf32>
    %88 = vector.extract_strided_slice %9 {offsets = [0, 0, 16], sizes = [1, 8, 4], strides = [1, 1, 1]} : vector<1x8x32xf32> to vector<1x8x4xf32>
    "tpu.trace_start"() <{level = 10 : i32, message = "bqd,bkd->bqk"}> : () -> ()
    %cst_47 = arith.constant dense<0.000000e+00> : vector<1x8x8xf32>
    %89 = tpu.matmul %86, %87, %cst_47 {dimension_numbers = #tpu.dot_dimension_numbers<[2], [2], [1], [1], [0, 0, 0, 1, 1, 1], [0], [0]>} : vector<1x8x4xf32>, vector<1x8x4xf32>, vector<1x8x8xf32> -> vector<1x8x8xf32>
    "tpu.trace_stop"() : () -> ()
    %cst_48 = arith.constant dense<0xFF800000> : vector<1x8xf32>
    %90 = vector.multi_reduction <maximumf>, %89, %cst_48 [2] : vector<1x8x8xf32> to vector<1x8xf32>
    %91 = vector.shape_cast %90 : vector<1x8xf32> to vector<1x8x1xf32>
    %92 = vector.broadcast %91 : vector<1x8x1xf32> to vector<1x8x8xf32>
    %93 = arith.subf %89, %92 : vector<1x8x8xf32>
    %94 = math.exp %93 : vector<1x8x8xf32>
    %cst_49 = arith.constant dense<0.000000e+00> : vector<1x8xf32>
    %95 = vector.multi_reduction <add>, %94, %cst_49 [2] : vector<1x8x8xf32> to vector<1x8xf32>
    %96 = vector.shape_cast %95 : vector<1x8xf32> to vector<1x8x1xf32>
    %97 = tpu.reciprocal %96 : vector<1x8x1xf32> -> vector<1x8x1xf32>
    %98 = vector.broadcast %97 : vector<1x8x1xf32> to vector<1x8x8xf32>
    %99 = arith.mulf %94, %98 : vector<1x8x8xf32>
    %c0_50 = arith.constant 0 : index
    %c4_51 = arith.constant 4 : index
    %c0_52 = arith.constant 0 : index
    %c0_53 = arith.constant 0 : index
    %100 = vector.load %arg8[%c0_50, %c4_51, %c0_52, %c0_53] : memref<1x8x8x8xf32, #tpu.memory_space<vmem>>, vector<1x1x8x8xf32>
    %101 = vector.shape_cast %100 : vector<1x1x8x8xf32> to vector<1x8x8xf32>
    %102 = vector.shape_cast %99 : vector<1x8x8xf32> to vector<1x1x8x8xf32>
    tpu.vector_store %arg8[%c0_50, %c4_51, %c0_52, %c0_53], %102 {strides = array<i32>} : memref<1x8x8x8xf32, #tpu.memory_space<vmem>>, vector<1x1x8x8xf32>,
    "tpu.trace_start"() <{level = 10 : i32, message = "bqk,bkd->bqd"}> : () -> ()
    %cst_54 = arith.constant dense<0.000000e+00> : vector<1x8x4xf32>
    %103 = tpu.matmul %99, %88, %cst_54 {dimension_numbers = #tpu.dot_dimension_numbers<[2], [1], [1], [2], [0, 0, 0, 1, 1, 2], [0], [0]>} : vector<1x8x8xf32>, vector<1x8x4xf32>, vector<1x8x4xf32> -> vector<1x8x4xf32>
    "tpu.trace_stop"() : () -> ()
    %c0_55 = arith.constant 0 : index
    %c0_56 = arith.constant 0 : index
    %c16 = arith.constant 16 : index
    %104 = vector.load %arg9[%c0_55, %c0_56, %c16] : memref<1x8x32xf32, #tpu.memory_space<vmem>>, vector<1x8x4xf32>
    tpu.vector_store %arg9[%c0_55, %c0_56, %c16], %103 {strides = array<i32>} : memref<1x8x32xf32, #tpu.memory_space<vmem>>, vector<1x8x4xf32>,
    %105 = vector.extract_strided_slice %7 {offsets = [0, 0, 20], sizes = [1, 8, 4], strides = [1, 1, 1]} : vector<1x8x32xf32> to vector<1x8x4xf32>
    %106 = vector.extract_strided_slice %8 {offsets = [0, 0, 20], sizes = [1, 8, 4], strides = [1, 1, 1]} : vector<1x8x32xf32> to vector<1x8x4xf32>
    %107 = vector.extract_strided_slice %9 {offsets = [0, 0, 20], sizes = [1, 8, 4], strides = [1, 1, 1]} : vector<1x8x32xf32> to vector<1x8x4xf32>
    "tpu.trace_start"() <{level = 10 : i32, message = "bqd,bkd->bqk"}> : () -> ()
    %cst_57 = arith.constant dense<0.000000e+00> : vector<1x8x8xf32>
    %108 = tpu.matmul %105, %106, %cst_57 {dimension_numbers = #tpu.dot_dimension_numbers<[2], [2], [1], [1], [0, 0, 0, 1, 1, 1], [0], [0]>} : vector<1x8x4xf32>, vector<1x8x4xf32>, vector<1x8x8xf32> -> vector<1x8x8xf32>
    "tpu.trace_stop"() : () -> ()
    %cst_58 = arith.constant dense<0xFF800000> : vector<1x8xf32>
    %109 = vector.multi_reduction <maximumf>, %108, %cst_58 [2] : vector<1x8x8xf32> to vector<1x8xf32>
    %110 = vector.shape_cast %109 : vector<1x8xf32> to vector<1x8x1xf32>
    %111 = vector.broadcast %110 : vector<1x8x1xf32> to vector<1x8x8xf32>
    %112 = arith.subf %108, %111 : vector<1x8x8xf32>
    %113 = math.exp %112 : vector<1x8x8xf32>
    %cst_59 = arith.constant dense<0.000000e+00> : vector<1x8xf32>
    %114 = vector.multi_reduction <add>, %113, %cst_59 [2] : vector<1x8x8xf32> to vector<1x8xf32>
    %115 = vector.shape_cast %114 : vector<1x8xf32> to vector<1x8x1xf32>
    %116 = tpu.reciprocal %115 : vector<1x8x1xf32> -> vector<1x8x1xf32>
    %117 = vector.broadcast %116 : vector<1x8x1xf32> to vector<1x8x8xf32>
    %118 = arith.mulf %113, %117 : vector<1x8x8xf32>
    %c0_60 = arith.constant 0 : index
    %c5 = arith.constant 5 : index
    %c0_61 = arith.constant 0 : index
    %c0_62 = arith.constant 0 : index
    %119 = vector.load %arg8[%c0_60, %c5, %c0_61, %c0_62] : memref<1x8x8x8xf32, #tpu.memory_space<vmem>>, vector<1x1x8x8xf32>
    %120 = vector.shape_cast %119 : vector<1x1x8x8xf32> to vector<1x8x8xf32>
    %121 = vector.shape_cast %118 : vector<1x8x8xf32> to vector<1x1x8x8xf32>
    tpu.vector_store %arg8[%c0_60, %c5, %c0_61, %c0_62], %121 {strides = array<i32>} : memref<1x8x8x8xf32, #tpu.memory_space<vmem>>, vector<1x1x8x8xf32>,
    "tpu.trace_start"() <{level = 10 : i32, message = "bqk,bkd->bqd"}> : () -> ()
    %cst_63 = arith.constant dense<0.000000e+00> : vector<1x8x4xf32>
    %122 = tpu.matmul %118, %107, %cst_63 {dimension_numbers = #tpu.dot_dimension_numbers<[2], [1], [1], [2], [0, 0, 0, 1, 1, 2], [0], [0]>} : vector<1x8x8xf32>, vector<1x8x4xf32>, vector<1x8x4xf32> -> vector<1x8x4xf32>
    "tpu.trace_stop"() : () -> ()
    %c0_64 = arith.constant 0 : index
    %c0_65 = arith.constant 0 : index
    %c20 = arith.constant 20 : index
    %123 = vector.load %arg9[%c0_64, %c0_65, %c20] : memref<1x8x32xf32, #tpu.memory_space<vmem>>, vector<1x8x4xf32>
    tpu.vector_store %arg9[%c0_64, %c0_65, %c20], %122 {strides = array<i32>} : memref<1x8x32xf32, #tpu.memory_space<vmem>>, vector<1x8x4xf32>,
    %124 = vector.extract_strided_slice %7 {offsets = [0, 0, 24], sizes = [1, 8, 4], strides = [1, 1, 1]} : vector<1x8x32xf32> to vector<1x8x4xf32>
    %125 = vector.extract_strided_slice %8 {offsets = [0, 0, 24], sizes = [1, 8, 4], strides = [1, 1, 1]} : vector<1x8x32xf32> to vector<1x8x4xf32>
    %126 = vector.extract_strided_slice %9 {offsets = [0, 0, 24], sizes = [1, 8, 4], strides = [1, 1, 1]} : vector<1x8x32xf32> to vector<1x8x4xf32>
    "tpu.trace_start"() <{level = 10 : i32, message = "bqd,bkd->bqk"}> : () -> ()
    %cst_66 = arith.constant dense<0.000000e+00> : vector<1x8x8xf32>
    %127 = tpu.matmul %124, %125, %cst_66 {dimension_numbers = #tpu.dot_dimension_numbers<[2], [2], [1], [1], [0, 0, 0, 1, 1, 1], [0], [0]>} : vector<1x8x4xf32>, vector<1x8x4xf32>, vector<1x8x8xf32> -> vector<1x8x8xf32>
    "tpu.trace_stop"() : () -> ()
    %cst_67 = arith.constant dense<0xFF800000> : vector<1x8xf32>
    %128 = vector.multi_reduction <maximumf>, %127, %cst_67 [2] : vector<1x8x8xf32> to vector<1x8xf32>
    %129 = vector.shape_cast %128 : vector<1x8xf32> to vector<1x8x1xf32>
    %130 = vector.broadcast %129 : vector<1x8x1xf32> to vector<1x8x8xf32>
    %131 = arith.subf %127, %130 : vector<1x8x8xf32>
    %132 = math.exp %131 : vector<1x8x8xf32>
    %cst_68 = arith.constant dense<0.000000e+00> : vector<1x8xf32>
    %133 = vector.multi_reduction <add>, %132, %cst_68 [2] : vector<1x8x8xf32> to vector<1x8xf32>
    %134 = vector.shape_cast %133 : vector<1x8xf32> to vector<1x8x1xf32>
    %135 = tpu.reciprocal %134 : vector<1x8x1xf32> -> vector<1x8x1xf32>
    %136 = vector.broadcast %135 : vector<1x8x1xf32> to vector<1x8x8xf32>
    %137 = arith.mulf %132, %136 : vector<1x8x8xf32>
    %c0_69 = arith.constant 0 : index
    %c6 = arith.constant 6 : index
    %c0_70 = arith.constant 0 : index
    %c0_71 = arith.constant 0 : index
    %138 = vector.load %arg8[%c0_69, %c6, %c0_70, %c0_71] : memref<1x8x8x8xf32, #tpu.memory_space<vmem>>, vector<1x1x8x8xf32>
    %139 = vector.shape_cast %138 : vector<1x1x8x8xf32> to vector<1x8x8xf32>
    %140 = vector.shape_cast %137 : vector<1x8x8xf32> to vector<1x1x8x8xf32>
    tpu.vector_store %arg8[%c0_69, %c6, %c0_70, %c0_71], %140 {strides = array<i32>} : memref<1x8x8x8xf32, #tpu.memory_space<vmem>>, vector<1x1x8x8xf32>,
    "tpu.trace_start"() <{level = 10 : i32, message = "bqk,bkd->bqd"}> : () -> ()
    %cst_72 = arith.constant dense<0.000000e+00> : vector<1x8x4xf32>
    %141 = tpu.matmul %137, %126, %cst_72 {dimension_numbers = #tpu.dot_dimension_numbers<[2], [1], [1], [2], [0, 0, 0, 1, 1, 2], [0], [0]>} : vector<1x8x8xf32>, vector<1x8x4xf32>, vector<1x8x4xf32> -> vector<1x8x4xf32>
    "tpu.trace_stop"() : () -> ()
    %c0_73 = arith.constant 0 : index
    %c0_74 = arith.constant 0 : index
    %c24 = arith.constant 24 : index
    %142 = vector.load %arg9[%c0_73, %c0_74, %c24] : memref<1x8x32xf32, #tpu.memory_space<vmem>>, vector<1x8x4xf32>
    tpu.vector_store %arg9[%c0_73, %c0_74, %c24], %141 {strides = array<i32>} : memref<1x8x32xf32, #tpu.memory_space<vmem>>, vector<1x8x4xf32>,
    %143 = vector.extract_strided_slice %7 {offsets = [0, 0, 28], sizes = [1, 8, 4], strides = [1, 1, 1]} : vector<1x8x32xf32> to vector<1x8x4xf32>
    %144 = vector.extract_strided_slice %8 {offsets = [0, 0, 28], sizes = [1, 8, 4], strides = [1, 1, 1]} : vector<1x8x32xf32> to vector<1x8x4xf32>
    %145 = vector.extract_strided_slice %9 {offsets = [0, 0, 28], sizes = [1, 8, 4], strides = [1, 1, 1]} : vector<1x8x32xf32> to vector<1x8x4xf32>
    "tpu.trace_start"() <{level = 10 : i32, message = "bqd,bkd->bqk"}> : () -> ()
    %cst_75 = arith.constant dense<0.000000e+00> : vector<1x8x8xf32>
    %146 = tpu.matmul %143, %144, %cst_75 {dimension_numbers = #tpu.dot_dimension_numbers<[2], [2], [1], [1], [0, 0, 0, 1, 1, 1], [0], [0]>} : vector<1x8x4xf32>, vector<1x8x4xf32>, vector<1x8x8xf32> -> vector<1x8x8xf32>
    "tpu.trace_stop"() : () -> ()
    %cst_76 = arith.constant dense<0xFF800000> : vector<1x8xf32>
    %147 = vector.multi_reduction <maximumf>, %146, %cst_76 [2] : vector<1x8x8xf32> to vector<1x8xf32>
    %148 = vector.shape_cast %147 : vector<1x8xf32> to vector<1x8x1xf32>
    %149 = vector.broadcast %148 : vector<1x8x1xf32> to vector<1x8x8xf32>
    %150 = arith.subf %146, %149 : vector<1x8x8xf32>
    %151 = math.exp %150 : vector<1x8x8xf32>
    %cst_77 = arith.constant dense<0.000000e+00> : vector<1x8xf32>
    %152 = vector.multi_reduction <add>, %151, %cst_77 [2] : vector<1x8x8xf32> to vector<1x8xf32>
    %153 = vector.shape_cast %152 : vector<1x8xf32> to vector<1x8x1xf32>
    %154 = tpu.reciprocal %153 : vector<1x8x1xf32> -> vector<1x8x1xf32>
    %155 = vector.broadcast %154 : vector<1x8x1xf32> to vector<1x8x8xf32>
    %156 = arith.mulf %151, %155 : vector<1x8x8xf32>
    %c0_78 = arith.constant 0 : index
    %c7 = arith.constant 7 : index
    %c0_79 = arith.constant 0 : index
    %c0_80 = arith.constant 0 : index
    %157 = vector.load %arg8[%c0_78, %c7, %c0_79, %c0_80] : memref<1x8x8x8xf32, #tpu.memory_space<vmem>>, vector<1x1x8x8xf32>
    %158 = vector.shape_cast %157 : vector<1x1x8x8xf32> to vector<1x8x8xf32>
    %159 = vector.shape_cast %156 : vector<1x8x8xf32> to vector<1x1x8x8xf32>
    tpu.vector_store %arg8[%c0_78, %c7, %c0_79, %c0_80], %159 {strides = array<i32>} : memref<1x8x8x8xf32, #tpu.memory_space<vmem>>, vector<1x1x8x8xf32>,
    "tpu.trace_start"() <{level = 10 : i32, message = "bqk,bkd->bqd"}> : () -> ()
    %cst_81 = arith.constant dense<0.000000e+00> : vector<1x8x4xf32>
    %160 = tpu.matmul %156, %145, %cst_81 {dimension_numbers = #tpu.dot_dimension_numbers<[2], [1], [1], [2], [0, 0, 0, 1, 1, 2], [0], [0]>} : vector<1x8x8xf32>, vector<1x8x4xf32>, vector<1x8x4xf32> -> vector<1x8x4xf32>
    "tpu.trace_stop"() : () -> ()
    %c0_82 = arith.constant 0 : index
    %c0_83 = arith.constant 0 : index
    %c28 = arith.constant 28 : index
    %161 = vector.load %arg9[%c0_82, %c0_83, %c28] : memref<1x8x32xf32, #tpu.memory_space<vmem>>, vector<1x8x4xf32>
    tpu.vector_store %arg9[%c0_82, %c0_83, %c28], %160 {strides = array<i32>} : memref<1x8x32xf32, #tpu.memory_space<vmem>>, vector<1x8x4xf32>,
    %c0_84 = arith.constant 0 : index
    %c0_85 = arith.constant 0 : index
    %c0_86 = arith.constant 0 : index
    %162 = vector.load %arg9[%c0_84, %c0_85, %c0_86] : memref<1x8x32xf32, #tpu.memory_space<vmem>>, vector<1x8x32xf32>
    %163 = vector.shape_cast %162 : vector<1x8x32xf32> to vector<8x32xf32>
    %c0_87 = arith.constant 0 : index
    %c0_88 = arith.constant 0 : index
    %164 = vector.load %arg5[%c0_87, %c0_88] : memref<32x32xf32, #tpu.memory_space<vmem>>, vector<32x32xf32>
    %cst_89 = arith.constant dense<0.000000e+00> : vector<8x32xf32>
    %165 = tpu.matmul %163, %164, %cst_89 {dimension_numbers = #tpu.dot_dimension_numbers<[1], [0], [0], [1], [0, 0, 1, 1], [], []>} : vector<8x32xf32>, vector<32x32xf32>, vector<8x32xf32> -> vector<8x32xf32>
    %c0_90 = arith.constant 0 : index
    %c0_91 = arith.constant 0 : index
    %166 = vector.load %arg6[%c0_90, %c0_91] : memref<1x32xf32, #tpu.memory_space<vmem>>, vector<1x32xf32>
    %167 = vector.broadcast %166 : vector<1x32xf32> to vector<8x32xf32>
    %168 = arith.addf %165, %167 : vector<8x32xf32>
    %c0_92 = arith.constant 0 : index
    %c0_93 = arith.constant 0 : index
    %169 = vector.load %arg7[%c0_92, %c0_93] : memref<8x32xf32, #tpu.memory_space<vmem>>, vector<8x32xf32>
    tpu.vector_store %arg7[%c0_92, %c0_93], %168 {strides = array<i32>} : memref<8x32xf32, #tpu.memory_space<vmem>>, vector<8x32xf32>,
    return
  }
  func.func @transform_0(%arg0: i32) -> (i32, i32) {
    %c0_i32 = arith.constant 0 : i32
    %c0_i32_0 = arith.constant 0 : i32
    return %arg0, %c0_i32 : i32, i32
  }
  func.func @transform_1(%arg0: i32) -> (i32, i32) {
    %c0_i32 = arith.constant 0 : i32
    %c0_i32_0 = arith.constant 0 : i32
    %c0_i32_1 = arith.constant 0 : i32
    return %c0_i32, %c0_i32_0 : i32, i32
  }
  func.func @transform_2(%arg0: i32) -> (i32, i32) {
    %c0_i32 = arith.constant 0 : i32
    %c0_i32_0 = arith.constant 0 : i32
    %c0_i32_1 = arith.constant 0 : i32
    return %c0_i32, %c0_i32_0 : i32, i32
  }
  func.func @transform_3(%arg0: i32) -> (i32, i32) {
    %c0_i32 = arith.constant 0 : i32
    %c0_i32_0 = arith.constant 0 : i32
    %c0_i32_1 = arith.constant 0 : i32
    return %c0_i32, %c0_i32_0 : i32, i32
  }
  func.func @transform_4(%arg0: i32) -> (i32, i32) {
    %c0_i32 = arith.constant 0 : i32
    %c0_i32_0 = arith.constant 0 : i32
    %c0_i32_1 = arith.constant 0 : i32
    return %c0_i32, %c0_i32_0 : i32, i32
  }
  func.func @transform_5(%arg0: i32) -> (i32, i32) {
    %c0_i32 = arith.constant 0 : i32
    %c0_i32_0 = arith.constant 0 : i32
    %c0_i32_1 = arith.constant 0 : i32
    return %c0_i32, %c0_i32_0 : i32, i32
  }
  func.func @transform_6(%arg0: i32) -> (i32, i32) {
    %c0_i32 = arith.constant 0 : i32
    %c0_i32_0 = arith.constant 0 : i32
    return %arg0, %c0_i32 : i32, i32
  }
  func.func @transform_7(%arg0: i32) -> (i32, i32, i32, i32) {
    %c0_i32 = arith.constant 0 : i32
    %c0_i32_0 = arith.constant 0 : i32
    %c0_i32_1 = arith.constant 0 : i32
    %c0_i32_2 = arith.constant 0 : i32
    return %arg0, %c0_i32, %c0_i32_0, %c0_i32_1 : i32, i32, i32, i32
  }
}

</mosaic_0001>

<llo_original>
// kernel: tpu_custom_call.1
$region0: #{tpu_custom_call.1}
  #allocation0 [shape = 'u32[]', space=smem, size = 0x4, offset = 0x4, fixed_abs, tag = 'smem constant byte address 0x4 - core index']
  #allocation1 [shape = 'u32[144,128]{1,0:T(1,128)}', space=vmem, size = 0x12000, scoped, tag = 'internal scratch']
  #allocation2 [shape = 'f32[1,8,32]{2,1,0:T(8,128)}', space=vmem, size = 0x1000, scoped, tag = 'scratch operand']
  %s0 = inlined_call_operand.hbm [shape: f32[16,32], index: 0, kind: input, shape index: {}]
  %s1 = inlined_call_operand.hbm [shape: f32[32,32], index: 1, kind: input, shape index: {}]
  %s2 = inlined_call_operand.hbm [shape: f32[32,32], index: 2, kind: input, shape index: {}]
  %s3 = inlined_call_operand.hbm [shape: f32[32,32], index: 3, kind: input, shape index: {}]
  %s4 = inlined_call_operand.hbm [shape: f32[32,32], index: 4, kind: input, shape index: {}]
  %s5 = inlined_call_operand.vmem [shape: f32[1,32], index: 5, kind: input, shape index: {}]
  %s6 = inlined_call_operand.hbm [shape: f32[16,32], index: 6, kind: output, shape index: {0}]
  %s7 = inlined_call_operand.hbm [shape: f32[2,8,8,8], index: 7, kind: output, shape index: {1}]
  %8 = xla_tuple %s6, %s7
  %s9 = sld [smem:[#allocation0]]
  $region85: #{tpu_custom_call.1} parent=0
    _
  %s11 = ssub.s32 1, %s9
  %s12 = scalar_select 0, %s11, %s9
  $region1: #{tpu_custom_call.1} parent=0
    #allocation3 [shape = 'u8[8192]{0}', space=vmem, size = 0x2000, scoped, tag = 'input window, operand 0']
    #allocation4 [shape = 's32[2]{0}', space=sflag, size = 0x8, scoped, tag = 'scoped memory for tpu_custom_call.1']
    #allocation5 [shape = 's32[2]{0}', space=sflag, size = 0x8, scoped, tag = 'scoped memory for tpu_custom_call.1']
    #allocation6 [shape = 'u8[16384]{0}', space=vmem, size = 0x4000, scoped, tag = 'input window, operand 1, single buffered']
    #allocation7 [shape = 's32[1]{0}', space=sflag, size = 0x4, scoped, tag = 'scoped memory for tpu_custom_call.1']
    #allocation8 [shape = 'u8[16384]{0}', space=vmem, size = 0x4000, scoped, tag = 'input window, operand 2, single buffered']
    #allocation9 [shape = 'u8[16384]{0}', space=vmem, size = 0x4000, scoped, tag = 'input window, operand 3, single buffered']
    #allocation10 [shape = 's32[1]{0}', space=sflag, size = 0x4, scoped, tag = 'scoped memory for tpu_custom_call.1']
    #allocation11 [shape = 'u8[16384]{0}', space=vmem, size = 0x4000, scoped, tag = 'input window, operand 4, single buffered']
    #allocation12 [shape = 'u8[8192]{0}', space=vmem, size = 0x2000, scoped, tag = 'output window, operand 0']
    #allocation13 [shape = 'u8[65536]{0}', space=vmem, size = 0x10000, scoped, tag = 'output window, operand 1']
    #allocation14 [shape = 's32[2]{0}', space=sflag, size = 0x8, scoped, tag = 'scoped memory for tpu_custom_call.1']
    %13 = vsyncpa [#allocation4], 0
    %s14 = scalar_lea.sflag [#allocation4], 1
    %15 = vsyncpa %s14, 0
    %16 = vsyncpa [#allocation7], 0
    %17 = vsyncpa [#allocation10], 0
    %18 = vsyncpa [#allocation5], 0
    %s19 = scalar_lea.sflag [#allocation5], 1
    %20 = vsyncpa %s19, 0
    %21 = vsyncpa [#allocation14], 0
    %s22 = scalar_lea.sflag [#allocation14], 1
    %23 = vsyncpa %s22, 0
    loop: start=0, step=1, limit=4
    $region2: #{tpu_custom_call.1} parent=1 // loop_pre_header
      _
    $region3: #{tpu_custom_call.1} parent=1 // loop_header
      %s25 = sphi 0, %s29
      %p26 = scmp.ge.s32.totalorder %s25, 4
      %s35 = sphi 0, %s37
      %s38 = sphi 0, %s35
      %s39 = sphi 0, %s38
      %s55 = sphi 0, %s39
      %s59 = sphi 0, %s59
      %s61 = sphi 0, %s59
      %s62 = sphi 0, %s61
      %s76 = sphi 0, %s62
      %s80 = sphi 0, %s80
      %s82 = sphi 0, %s80
      %s83 = sphi 0, %s82
      %s97 = sphi 0, %s83
      %s101 = sphi 0, %s101
      %s103 = sphi 0, %s101
      %s104 = sphi 0, %s103
      %s118 = sphi 0, %s104
      %s122 = sphi 0, %s122
      %s124 = sphi 0, %s122
      %s125 = sphi 0, %s124
      %s139 = sphi 0, %s125
      %s143 = sphi 0, %s143
      %s145 = sphi 0, %s143
      %s146 = sphi 0, %s145
      %s160 = sphi 0, %s146
      %s166 = sphi 0, %s168
      %s169 = sphi 0, %s166
      %s170 = sphi 0, %s169
      %s186 = sphi 0, %s170
      %s192 = sphi 0, %s194
      %s195 = sphi 0, %s192
      %s196 = sphi 0, %s195
      %s212 = sphi 0, %s196
    $region4: #{tpu_custom_call.1} parent=1 // loop_header_branch
      %28 = sbr.rel (%p26) target = $region8
    $region5: #{tpu_custom_call.1} parent=1 // loop_body
      %s30 = ssub.s32 %s25, 1
      %s31 = ssub.s32 %s25, 2
      %s32 = sadd.s32 %s25, 1
      %s33 = ssub.s32 %s25, %s32
      %p34 = scmp.eq.s32.totalorder %s33, 0
      %s36 = sadd.s32 %s35, 1
      %s37 = scalar_select %p34, %s35, %s36
      %p40 = pneg %p34
      %p41 = scmp.eq.s32.totalorder %s25, 1
      %p42 = por %p40, %p41
      %p43 = scmp.ne.s32.totalorder %s35, %s38
      %p44 = scmp.eq.s32.totalorder %s25, 0
      %p45 = por %p43, %p44
      %p46 = scmp.ne.s32.totalorder %s35, %s38
      %p47 = scmp.eq.s32.totalorder %s30, 1
      %p48 = por %p46, %p47
      %p49 = scmp.ne.s32.totalorder %s38, %s39
      %p50 = scmp.eq.s32.totalorder %s30, 0
      %p51 = por %p49, %p50
      %p52 = scmp.ne.s32.totalorder %s38, %s39
      %p53 = scmp.eq.s32.totalorder %s31, 1
      %p54 = por %p52, %p53
      %p56 = scmp.ne.s32.totalorder %s39, %s55
      %p57 = scmp.eq.s32.totalorder %s31, 0
      %p58 = por %p56, %p57
      %s60 = sadd.s32 %s59, 1
      %p63 = scmp.eq.s32.totalorder %s25, 1
      %p64 = scmp.ne.s32.totalorder %s59, %s61
      %p65 = scmp.eq.s32.totalorder %s25, 0
      %p66 = por %p64, %p65
      %p67 = scmp.ne.s32.totalorder %s59, %s61
      %p68 = scmp.eq.s32.totalorder %s30, 1
      %p69 = por %p67, %p68
      %p70 = scmp.ne.s32.totalorder %s61, %s62
      %p71 = scmp.eq.s32.totalorder %s30, 0
      %p72 = por %p70, %p71
      %p73 = scmp.ne.s32.totalorder %s61, %s62
      %p74 = scmp.eq.s32.totalorder %s31, 1
      %p75 = por %p73, %p74
      %p77 = scmp.ne.s32.totalorder %s62, %s76
      %p78 = scmp.eq.s32.totalorder %s31, 0
      %p79 = por %p77, %p78
      %s81 = sadd.s32 %s80, 1
      %p84 = scmp.eq.s32.totalorder %s25, 1
      %p85 = scmp.ne.s32.totalorder %s80, %s82
      %p86 = scmp.eq.s32.totalorder %s25, 0
      %p87 = por %p85, %p86
      %p88 = scmp.ne.s32.totalorder %s80, %s82
      %p89 = scmp.eq.s32.totalorder %s30, 1
      %p90 = por %p88, %p89
      %p91 = scmp.ne.s32.totalorder %s82, %s83
      %p92 = scmp.eq.s32.totalorder %s30, 0
      %p93 = por %p91, %p92
      %p94 = scmp.ne.s32.totalorder %s82, %s83
      %p95 = scmp.eq.s32.totalorder %s31, 1
      %p96 = por %p94, %p95
      %p98 = scmp.ne.s32.totalorder %s83, %s97
      %p99 = scmp.eq.s32.totalorder %s31, 0
      %p100 = por %p98, %p99
      %s102 = sadd.s32 %s101, 1
      %p105 = scmp.eq.s32.totalorder %s25, 1
      %p106 = scmp.ne.s32.totalorder %s101, %s103
      %p107 = scmp.eq.s32.totalorder %s25, 0
      %p108 = por %p106, %p107
      %p109 = scmp.ne.s32.totalorder %s101, %s103
      %p110 = scmp.eq.s32.totalorder %s30, 1
      %p111 = por %p109, %p110
      %p112 = scmp.ne.s32.totalorder %s103, %s104
      %p113 = scmp.eq.s32.totalorder %s30, 0
      %p114 = por %p112, %p113
      %p115 = scmp.ne.s32.totalorder %s103, %s104
      %p116 = scmp.eq.s32.totalorder %s31, 1
      %p117 = por %p115, %p116
      %p119 = scmp.ne.s32.totalorder %s104, %s118
      %p120 = scmp.eq.s32.totalorder %s31, 0
      %p121 = por %p119, %p120
      %s123 = sadd.s32 %s122, 1
      %p126 = scmp.eq.s32.totalorder %s25, 1
      %p127 = scmp.ne.s32.totalorder %s122, %s124
      %p128 = scmp.eq.s32.totalorder %s25, 0
      %p129 = por %p127, %p128
      %p130 = scmp.ne.s32.totalorder %s122, %s124
      %p131 = scmp.eq.s32.totalorder %s30, 1
      %p132 = por %p130, %p131
      %p133 = scmp.ne.s32.totalorder %s124, %s125
      %p134 = scmp.eq.s32.totalorder %s30, 0
      %p135 = por %p133, %p134
      %p136 = scmp.ne.s32.totalorder %s124, %s125
      %p137 = scmp.eq.s32.totalorder %s31, 1
      %p138 = por %p136, %p137
      %p140 = scmp.ne.s32.totalorder %s125, %s139
      %p141 = scmp.eq.s32.totalorder %s31, 0
      %p142 = por %p140, %p141
      %s144 = sadd.s32 %s143, 1
      %p147 = scmp.eq.s32.totalorder %s25, 1
      %p148 = scmp.ne.s32.totalorder %s143, %s145
      %p149 = scmp.eq.s32.totalorder %s25, 0
      %p150 = por %p148, %p149
      %p151 = scmp.ne.s32.totalorder %s143, %s145
      %p152 = scmp.eq.s32.totalorder %s30, 1
      %p153 = por %p151, %p152
      %p154 = scmp.ne.s32.totalorder %s145, %s146
      %p155 = scmp.eq.s32.totalorder %s30, 0
      %p156 = por %p154, %p155
      %p157 = scmp.ne.s32.totalorder %s145, %s146
      %p158 = scmp.eq.s32.totalorder %s31, 1
      %p159 = por %p157, %p158
      %p161 = scmp.ne.s32.totalorder %s146, %s160
      %p162 = scmp.eq.s32.totalorder %s31, 0
      %p163 = por %p161, %p162
      %s164 = ssub.s32 %s25, %s32
      %p165 = scmp.eq.s32.totalorder %s164, 0
      %s167 = sadd.s32 %s166, 1
      %s168 = scalar_select %p165, %s166, %s167
      %p171 = pneg %p165
      %p172 = scmp.eq.s32.totalorder %s25, 1
      %p173 = por %p171, %p172
      %p174 = scmp.ne.s32.totalorder %s166, %s169
      %p175 = scmp.eq.s32.totalorder %s25, 0
      %p176 = por %p174, %p175
      %p177 = scmp.ne.s32.totalorder %s166, %s169
      %p178 = scmp.eq.s32.totalorder %s30, 1
      %p179 = por %p177, %p178
      %p180 = scmp.ne.s32.totalorder %s169, %s170
      %p181 = scmp.eq.s32.totalorder %s30, 0
      %p182 = por %p180, %p181
      %p183 = scmp.ne.s32.totalorder %s169, %s170
      %p184 = scmp.eq.s32.totalorder %s31, 1
      %p185 = por %p183, %p184
      %p187 = scmp.ne.s32.totalorder %s170, %s186
      %p188 = scmp.eq.s32.totalorder %s31, 0
      %p189 = por %p187, %p188
      %s190 = ssub.s32 %s25, %s32
      %p191 = scmp.eq.s32.totalorder %s190, 0
      %s193 = sadd.s32 %s192, 1
      %s194 = scalar_select %p191, %s192, %s193
      %p197 = pneg %p191
      %p198 = scmp.eq.s32.totalorder %s25, 1
      %p199 = por %p197, %p198
      %p200 = scmp.ne.s32.totalorder %s192, %s195
      %p201 = scmp.eq.s32.totalorder %s25, 0
      %p202 = por %p200, %p201
      %p203 = scmp.ne.s32.totalorder %s192, %s195
      %p204 = scmp.eq.s32.totalorder %s30, 1
      %p205 = por %p203, %p204
      %p206 = scmp.ne.s32.totalorder %s195, %s196
      %p207 = scmp.eq.s32.totalorder %s30, 0
      %p208 = por %p206, %p207
      %p209 = scmp.ne.s32.totalorder %s195, %s196
      %p210 = scmp.eq.s32.totalorder %s31, 1
      %p211 = por %p209, %p210
      %p213 = scmp.ne.s32.totalorder %s196, %s212
      %p214 = scmp.eq.s32.totalorder %s31, 0
      %p215 = por %p213, %p214
      %p216 = scmp.le.s32.totalorder 1, %s25
      %p217 = scmp.lt.s32.totalorder %s25, 3
      %p218 = pnand %p216, %p217
      %p219 = pneg %p218
      // Predicated region
      $region9: #{tpu_custom_call.1} parent=5 // pred_check
        _
      $region10: #{tpu_custom_call.1} parent=5 // pred_check_branch
        %221 = sbr.rel (%p218) target = $region12
      $region11: #{tpu_custom_call.1} parent=5 // pred_region
        %s222 = ssub.s32 %s25, 1
        // Predicated region
        $region13: #{tpu_custom_call.1} parent=11 // pred_check
          %p223 = pneg %p72
        $region14: #{tpu_custom_call.1} parent=11 // pred_check_branch
          %225 = sbr.rel (%p223) target = $region16
        $region15: #{tpu_custom_call.1} parent=11 // pred_region
          %s227 = ssub.s32 512, 512
          %228 = vsyncadd [#allocation7], %s227
          %s229 = sshll.u32 [#allocation6], 4
          %s230 = int_to_ptr.vmem [resolvable:$true] %s229
          %235 = dma.hbm_to_vmem [thread:$0]  %s1, 512, %s230, [#allocation7], 128, 128, 8
        $region16: #{tpu_custom_call.1} parent=11 // pred_fallthru
          _
        // Predicated region
        $region17: #{tpu_custom_call.1} parent=11 // pred_check
          %p236 = pneg %p93
        $region18: #{tpu_custom_call.1} parent=11 // pred_check_branch
          %238 = sbr.rel (%p236) target = $region20
        $region19: #{tpu_custom_call.1} parent=11 // pred_region
          %s240 = ssub.s32 512, 512
          %241 = vsyncadd [#allocation7], %s240
          %s242 = sshll.u32 [#allocation8], 4
          %s243 = int_to_ptr.vmem [resolvable:$true] %s242
          %248 = dma.hbm_to_vmem [thread:$0]  %s2, 512, %s243, [#allocation7], 128, 128, 8
        $region20: #{tpu_custom_call.1} parent=11 // pred_fallthru
          _
        // Predicated region
        $region21: #{tpu_custom_call.1} parent=11 // pred_check
          %p249 = pneg %p114
        $region22: #{tpu_custom_call.1} parent=11 // pred_check_branch
          %251 = sbr.rel (%p249) target = $region24
        $region23: #{tpu_custom_call.1} parent=11 // pred_region
          %s253 = ssub.s32 512, 512
          %254 = vsyncadd [#allocation10], %s253
          %s255 = sshll.u32 [#allocation9], 4
          %s256 = int_to_ptr.vmem [resolvable:$true] %s255
          %261 = dma.hbm_to_vmem [thread:$0]  %s3, 512, %s256, [#allocation10], 128, 128, 8
        $region24: #{tpu_custom_call.1} parent=11 // pred_fallthru
          _
        // Predicated region
        $region25: #{tpu_custom_call.1} parent=11 // pred_check
          %p262 = pneg %p135
        $region26: #{tpu_custom_call.1} parent=11 // pred_check_branch
          %264 = sbr.rel (%p262) target = $region28
        $region27: #{tpu_custom_call.1} parent=11 // pred_region
          %s266 = ssub.s32 512, 512
          %267 = vsyncadd [#allocation10], %s266
          %s268 = sshll.u32 [#allocation11], 4
          %s269 = int_to_ptr.vmem [resolvable:$true] %s268
          %274 = dma.hbm_to_vmem [thread:$0]  %s4, 512, %s269, [#allocation10], 128, 128, 8
        $region28: #{tpu_custom_call.1} parent=11 // pred_fallthru
          _
        // Predicated region
        $region29: #{tpu_custom_call.1} parent=11 // pred_check
          %p275 = pneg %p156
        $region30: #{tpu_custom_call.1} parent=11 // pred_check_branch
          %277 = sbr.rel (%p275) target = $region32
        $region31: #{tpu_custom_call.1} parent=11 // pred_region
          _
        $region32: #{tpu_custom_call.1} parent=11 // pred_fallthru
          _
      $region12: #{tpu_custom_call.1} parent=5 // pred_fallthru
        _
      %p278 = scmp.lt.s32.totalorder %s25, 2
      // Predicated region
      $region33: #{tpu_custom_call.1} parent=5 // pred_check
        %p279 = pneg %p278
      $region34: #{tpu_custom_call.1} parent=5 // pred_check_branch
        %281 = sbr.rel (%p279) target = $region36
      $region35: #{tpu_custom_call.1} parent=5 // pred_region
        // Predicated region
        $region37: #{tpu_custom_call.1} parent=35 // pred_check
          %p282 = pneg %p45
        $region38: #{tpu_custom_call.1} parent=35 // pred_check_branch
          %284 = sbr.rel (%p282) target = $region40
        $region39: #{tpu_custom_call.1} parent=35 // pred_region
          %s285 = sand.u32 %s35, 1
          %s286 = scalar_lea.sflag [#allocation4], %s285
          %s287 = sand.u32 %s35, 1
          %s288 = smul.addr %s287, 8
          %s289 = scalar_lea.vmem [#allocation3], %s288
          %s291 = ssub.s32 128, 128
          %292 = vsyncadd %s286, %s291
          %s293 = smul.addr %s25, 128
          %s294 = scalar_lea.hbm %s0, %s293
          %s296 = sshll.u32 %s289, 4
          %s297 = int_to_ptr.vmem [resolvable:$true] %s296
          %299 = dma.hbm_to_vmem [thread:$0]  %s294, 128, %s297, %s286
        $region40: #{tpu_custom_call.1} parent=35 // pred_fallthru
          _
      $region36: #{tpu_custom_call.1} parent=5 // pred_fallthru
        _
      %p300 = scmp.le.s32.totalorder 1, %s25
      %p301 = scmp.lt.s32.totalorder %s25, 3
      %p302 = pnand %p300, %p301
      %p303 = pneg %p302
      // Predicated region
      $region41: #{tpu_custom_call.1} parent=5 // pred_check
        _
      $region42: #{tpu_custom_call.1} parent=5 // pred_check_branch
        %305 = sbr.rel (%p302) target = $region44
      $region43: #{tpu_custom_call.1} parent=5 // pred_region
        %s306 = ssub.s32 %s25, 1
        %s307 = sand.u32 %s38, 1
        %s308 = scalar_lea.sflag [#allocation4], %s307
        %s309 = sand.u32 %s38, 1
        %s310 = smul.addr %s309, 8
        %s311 = scalar_lea.vmem [#allocation3], %s310
        // Predicated region
        $region45: #{tpu_custom_call.1} parent=43 // pred_check
          %p312 = pneg %p51
        $region46: #{tpu_custom_call.1} parent=43 // pred_check_branch
          %314 = sbr.rel (%p312) target = $region48
        $region47: #{tpu_custom_call.1} parent=43 // pred_region
          %315 = dma.done %s308, 128
        $region48: #{tpu_custom_call.1} parent=43 // pred_fallthru
          _
        // Predicated region
        $region49: #{tpu_custom_call.1} parent=43 // pred_check
          %p316 = pneg %p72
        $region50: #{tpu_custom_call.1} parent=43 // pred_check_branch
          %318 = sbr.rel (%p316) target = $region52
        $region51: #{tpu_custom_call.1} parent=43 // pred_region
          %319 = dma.done [#allocation7], 512
        $region52: #{tpu_custom_call.1} parent=43 // pred_fallthru
          _
        // Predicated region
        $region53: #{tpu_custom_call.1} parent=43 // pred_check
          %p320 = pneg %p93
        $region54: #{tpu_custom_call.1} parent=43 // pred_check_branch
          %322 = sbr.rel (%p320) target = $region56
        $region55: #{tpu_custom_call.1} parent=43 // pred_region
          %323 = dma.done [#allocation7], 512
        $region56: #{tpu_custom_call.1} parent=43 // pred_fallthru
          _
        // Predicated region
        $region57: #{tpu_custom_call.1} parent=43 // pred_check
          %p324 = pneg %p114
        $region58: #{tpu_custom_call.1} parent=43 // pred_check_branch
          %326 = sbr.rel (%p324) target = $region60
        $region59: #{tpu_custom_call.1} parent=43 // pred_region
          %327 = dma.done [#allocation10], 512
        $region60: #{tpu_custom_call.1} parent=43 // pred_fallthru
          _
        // Predicated region
        $region61: #{tpu_custom_call.1} parent=43 // pred_check
          %p328 = pneg %p135
        $region62: #{tpu_custom_call.1} parent=43 // pred_check_branch
          %330 = sbr.rel (%p328) target = $region64
        $region63: #{tpu_custom_call.1} parent=43 // pred_region
          %331 = dma.done [#allocation10], 512
        $region64: #{tpu_custom_call.1} parent=43 // pred_fallthru
          _
        %s332 = sand.u32 %s38, 1
        %s333 = scalar_lea.sflag [#allocation4], %s332
        %s334 = sand.u32 %s38, 1
        %s335 = smul.addr %s334, 8
        %s336 = scalar_lea.vmem [#allocation3], %s335
        %p337 = pneg %p51
        %p338 = pneg %p48
        %p339 = pneg %p72
        %p340 = pneg %p69
        %p341 = pneg %p93
        %p342 = pneg %p90
        %p343 = pneg %p114
        %p344 = pneg %p111
        %p345 = pneg %p135
        %p346 = pneg %p132
        %p347 = pneg %p156
        %p348 = pneg %p153
        %p349 = pneg %p182
        %p350 = pneg %p179
        %s351 = sand.u32 %s169, 1
        %s352 = scalar_lea.sflag [#allocation5], %s351
        %s353 = sand.u32 %s169, 1
        %s354 = smul.addr %s353, 8
        %s355 = scalar_lea.vmem [#allocation12], %s354
        %p356 = pneg %p208
        %p357 = pneg %p205
        %s358 = sand.u32 %s195, 1
        %s359 = scalar_lea.sflag [#allocation14], %s358
        %s360 = sand.u32 %s195, 1
        %s361 = smul.addr %s360, 64
        %s362 = scalar_lea.vmem [#allocation13], %s361
        %v363 = vld [vmem:[%s311] sm:$0xff]
        %v364 = vld [vmem:[#allocation6] sm:$0xff]
        %v365 = vld [vmem:[#allocation6 + $0x8] sm:$0xff]
        %v366 = vld [vmem:[#allocation6 + $0x10] sm:$0xff]
        %v367 = vld [vmem:[#allocation6 + $0x18] sm:$0xff]
        %vm368 = vcmask 261120
        %v370 = vsel %vm368, %v363, 0
        %372 = vmatprep.subr.mxu0 0.0
        %373 = vmatpush1.msra.mxu0 %v364
        %374 = vmatprep.subr.mxu0 0.0
        %375 = vmatpush1.msra.mxu0 %v365
        %376 = vmatprep.subr.mxu0 0.0
        %377 = vmatpush1.msra.mxu0 %v366
        %378 = vmatprep.subr.mxu0 0.0
        %379 = vmatpush1.msra.mxu0 %v367
        %380 = vmatprep.subr.mxu0 0.0
        %381 = vmatpush1.msra.mxu0 0.0
        %382 = vmatprep.subr.mxu0 0.0
        %383 = vmatpush1.msra.mxu0 0.0
        %384 = vmatprep.subr.mxu0 0.0
        %385 = vmatpush1.msra.mxu0 0.0
        %386 = vmatprep.subr.mxu0 0.0
        %387 = vmatpush1.msra.mxu0 0.0
        %388 = vmatprep.subr.mxu0 0.0
        %389 = vmatpush1.msra.mxu0 0.0
        %390 = vmatprep.subr.mxu0 0.0
        %391 = vmatpush1.msra.mxu0 0.0
        %392 = vmatprep.subr.mxu0 0.0
        %393 = vmatpush1.msra.mxu0 0.0
        %394 = vmatprep.subr.mxu0 0.0
        %395 = vmatpush1.msra.mxu0 0.0
        %396 = vmatprep.subr.mxu0 0.0
        %397 = vmatpush1.msra.mxu0 0.0
        %398 = vmatprep.subr.mxu0 0.0
        %399 = vmatpush1.msra.mxu0 0.0
        %400 = vmatprep.subr.mxu0 0.0
        %401 = vmatpush1.msra.mxu0 0.0
        %402 = vmatprep.subr.mxu0 0.0
        %403 = vmatpush1.msra.mxu0 0.0
        %404 = vmatprep.subr.mxu0 0.0
        %405 = vmatpush1.msra.mxu0 0.0
        %406 = vmatprep.subr.mxu0 0.0
        %407 = vmatpush1.msra.mxu0 0.0
        %408 = vmatprep.subr.mxu0 0.0
        %409 = vmatpush1.msra.mxu0 0.0
        %410 = vmatprep.subr.mxu0 0.0
        %411 = vmatpush1.msra.mxu0 0.0
        %412 = vmatprep.subr.mxu0 0.0
        %413 = vmatpush1.msra.mxu0 0.0
        %414 = vmatprep.subr.mxu0 0.0
        %415 = vmatpush1.msra.mxu0 0.0
        %416 = vmatprep.subr.mxu0 0.0
        %417 = vmatpush1.msra.mxu0 0.0
        %418 = vmatprep.subr.mxu0 0.0
        %419 = vmatpush1.msra.mxu0 0.0
        %420 = vmatprep.subr.mxu0 0.0
        %421 = vmatpush1.msra.mxu0 0.0
        %422 = vmatprep.subr.mxu0 0.0
        %423 = vmatpush1.msra.mxu0 0.0
        %424 = vmatprep.subr.mxu0 0.0
        %425 = vmatpush1.msra.mxu0 0.0
        %426 = vmatprep.subr.mxu0 0.0
        %427 = vmatpush1.msra.mxu0 0.0
        %428 = vmatprep.subr.mxu0 0.0
        %429 = vmatpush1.msra.mxu0 0.0
        %430 = vmatprep.subr.mxu0 0.0
        %431 = vmatpush1.msra.mxu0 0.0
        %432 = vmatprep.subr.mxu0 0.0
        %433 = vmatpush1.msra.mxu0 0.0
        %434 = vmatprep.subr.mxu0 0.0
        %435 = vmatpush1.msra.mxu0 0.0
        %436 = vmatprep.mubr.f32.mxu0 0.0
        %437 = vmatmul.mubr.f32.gmra.mrb[0].mxu0 %v370
        %v438 = vpop.f32.mrb[0].mxu0
        %v439 = vadd.f32 0.0, %v438
        %v440 = vpop.f32.mrb[0].mxu0
        %441 = vdwg.mxu0
        %v442 = vld [vmem:[#allocation8] sm:$0xff]
        %v443 = vld [vmem:[#allocation8 + $0x8] sm:$0xff]
        %v444 = vld [vmem:[#allocation8 + $0x10] sm:$0xff]
        %v445 = vld [vmem:[#allocation8 + $0x18] sm:$0xff]
        %446 = vmatprep.subr.mxu0 0.0
        %447 = vmatpush1.msra.mxu0 %v442
        %448 = vmatprep.subr.mxu0 0.0
        %449 = vmatpush1.msra.mxu0 %v443
        %450 = vmatprep.subr.mxu0 0.0
        %451 = vmatpush1.msra.mxu0 %v444
        %452 = vmatprep.subr.mxu0 0.0
        %453 = vmatpush1.msra.mxu0 %v445
        %454 = vmatprep.subr.mxu0 0.0
        %455 = vmatpush1.msra.mxu0 0.0
        %456 = vmatprep.subr.mxu0 0.0
        %457 = vmatpush1.msra.mxu0 0.0
        %458 = vmatprep.subr.mxu0 0.0
        %459 = vmatpush1.msra.mxu0 0.0
        %460 = vmatprep.subr.mxu0 0.0
        %461 = vmatpush1.msra.mxu0 0.0
        %462 = vmatprep.subr.mxu0 0.0
        %463 = vmatpush1.msra.mxu0 0.0
        %464 = vmatprep.subr.mxu0 0.0
        %465 = vmatpush1.msra.mxu0 0.0
        %466 = vmatprep.subr.mxu0 0.0
        %467 = vmatpush1.msra.mxu0 0.0
        %468 = vmatprep.subr.mxu0 0.0
        %469 = vmatpush1.msra.mxu0 0.0
        %470 = vmatprep.subr.mxu0 0.0
        %471 = vmatpush1.msra.mxu0 0.0
        %472 = vmatprep.subr.mxu0 0.0
        %473 = vmatpush1.msra.mxu0 0.0
        %474 = vmatprep.subr.mxu0 0.0
        %475 = vmatpush1.msra.mxu0 0.0
        %476 = vmatprep.subr.mxu0 0.0
        %477 = vmatpush1.msra.mxu0 0.0
        %478 = vmatprep.subr.mxu0 0.0
        %479 = vmatpush1.msra.mxu0 0.0
        %480 = vmatprep.subr.mxu0 0.0
        %481 = vmatpush1.msra.mxu0 0.0
        %482 = vmatprep.subr.mxu0 0.0
        %483 = vmatpush1.msra.mxu0 0.0
        %484 = vmatprep.subr.mxu0 0.0
        %485 = vmatpush1.msra.mxu0 0.0
        %486 = vmatprep.subr.mxu0 0.0
        %487 = vmatpush1.msra.mxu0 0.0
        %488 = vmatprep.subr.mxu0 0.0
        %489 = vmatpush1.msra.mxu0 0.0
        %490 = vmatprep.subr.mxu0 0.0
        %491 = vmatpush1.msra.mxu0 0.0
        %492 = vmatprep.subr.mxu0 0.0
        %493 = vmatpush1.msra.mxu0 0.0
        %494 = vmatprep.subr.mxu0 0.0
        %495 = vmatpush1.msra.mxu0 0.0
        %496 = vmatprep.subr.mxu0 0.0
        %497 = vmatpush1.msra.mxu0 0.0
        %498 = vmatprep.subr.mxu0 0.0
        %499 = vmatpush1.msra.mxu0 0.0
        %500 = vmatprep.subr.mxu0 0.0
        %501 = vmatpush1.msra.mxu0 0.0
        %502 = vmatprep.subr.mxu0 0.0
        %503 = vmatpush1.msra.mxu0 0.0
        %504 = vmatprep.subr.mxu0 0.0
        %505 = vmatpush1.msra.mxu0 0.0
        %506 = vmatprep.subr.mxu0 0.0
        %507 = vmatpush1.msra.mxu0 0.0
        %508 = vmatprep.subr.mxu0 0.0
        %509 = vmatpush1.msra.mxu0 0.0
        %510 = vmatprep.mubr.f32.mxu0 0.0
        %511 = vmatmul.mubr.f32.gmra.mrb[0].mxu0 %v370
        %v512 = vpop.f32.mrb[0].mxu0
        %v513 = vadd.f32 0.0, %v512
        %v514 = vpop.f32.mrb[0].mxu0
        %515 = vdwg.mxu0
        %v516 = vld [vmem:[#allocation9] sm:$0xff]
        %v517 = vld [vmem:[#allocation9 + $0x8] sm:$0xff]
        %v518 = vld [vmem:[#allocation9 + $0x10] sm:$0xff]
        %v519 = vld [vmem:[#allocation9 + $0x18] sm:$0xff]
        %520 = vmatprep.subr.mxu0 0.0
        %521 = vmatpush1.msra.mxu0 %v516
        %522 = vmatprep.subr.mxu0 0.0
        %523 = vmatpush1.msra.mxu0 %v517
        %524 = vmatprep.subr.mxu0 0.0
        %525 = vmatpush1.msra.mxu0 %v518
        %526 = vmatprep.subr.mxu0 0.0
        %527 = vmatpush1.msra.mxu0 %v519
        %528 = vmatprep.subr.mxu0 0.0
        %529 = vmatpush1.msra.mxu0 0.0
        %530 = vmatprep.subr.mxu0 0.0
        %531 = vmatpush1.msra.mxu0 0.0
        %532 = vmatprep.subr.mxu0 0.0
        %533 = vmatpush1.msra.mxu0 0.0
        %534 = vmatprep.subr.mxu0 0.0
        %535 = vmatpush1.msra.mxu0 0.0
        %536 = vmatprep.subr.mxu0 0.0
        %537 = vmatpush1.msra.mxu0 0.0
        %538 = vmatprep.subr.mxu0 0.0
        %539 = vmatpush1.msra.mxu0 0.0
        %540 = vmatprep.subr.mxu0 0.0
        %541 = vmatpush1.msra.mxu0 0.0
        %542 = vmatprep.subr.mxu0 0.0
        %543 = vmatpush1.msra.mxu0 0.0
        %544 = vmatprep.subr.mxu0 0.0
        %545 = vmatpush1.msra.mxu0 0.0
        %546 = vmatprep.subr.mxu0 0.0
        %547 = vmatpush1.msra.mxu0 0.0
        %548 = vmatprep.subr.mxu0 0.0
        %549 = vmatpush1.msra.mxu0 0.0
        %550 = vmatprep.subr.mxu0 0.0
        %551 = vmatpush1.msra.mxu0 0.0
        %552 = vmatprep.subr.mxu0 0.0
        %553 = vmatpush1.msra.mxu0 0.0
        %554 = vmatprep.subr.mxu0 0.0
        %555 = vmatpush1.msra.mxu0 0.0
        %556 = vmatprep.subr.mxu0 0.0
        %557 = vmatpush1.msra.mxu0 0.0
        %558 = vmatprep.subr.mxu0 0.0
        %559 = vmatpush1.msra.mxu0 0.0
        %560 = vmatprep.subr.mxu0 0.0
        %561 = vmatpush1.msra.mxu0 0.0
        %562 = vmatprep.subr.mxu0 0.0
        %563 = vmatpush1.msra.mxu0 0.0
        %564 = vmatprep.subr.mxu0 0.0
        %565 = vmatpush1.msra.mxu0 0.0
        %566 = vmatprep.subr.mxu0 0.0
        %567 = vmatpush1.msra.mxu0 0.0
        %568 = vmatprep.subr.mxu0 0.0
        %569 = vmatpush1.msra.mxu0 0.0
        %570 = vmatprep.subr.mxu0 0.0
        %571 = vmatpush1.msra.mxu0 0.0
        %572 = vmatprep.subr.mxu0 0.0
        %573 = vmatpush1.msra.mxu0 0.0
        %574 = vmatprep.subr.mxu0 0.0
        %575 = vmatpush1.msra.mxu0 0.0
        %576 = vmatprep.subr.mxu0 0.0
        %577 = vmatpush1.msra.mxu0 0.0
        %578 = vmatprep.subr.mxu0 0.0
        %579 = vmatpush1.msra.mxu0 0.0
        %580 = vmatprep.subr.mxu0 0.0
        %581 = vmatpush1.msra.mxu0 0.0
        %582 = vmatprep.subr.mxu0 0.0
        %583 = vmatpush1.msra.mxu0 0.0
        %584 = vmatprep.mubr.f32.mxu0 0.0
        %585 = vmatmul.mubr.f32.gmra.mrb[0].mxu0 %v370
        %v586 = vpop.f32.mrb[0].mxu0
        %v587 = vadd.f32 0.0, %v586
        %v588 = vpop.f32.mrb[0].mxu0
        %589 = vdwg.mxu0
        %vm590 = vcmask 31744
        %v592 = vsel %vm590, %v439, 0
        %v595 = vsel %vm590, %v513, 0
        %597 = vmatprep.subr.mxu0 0.0
        %598 = vmatpush1.xpose.msra.mxu0 %v595
        %599 = vmatprep.subr.mxu0 0.0
        %600 = vmatpush1.xpose.msra.mxu0 0.0
        %601 = vmatprep.subr.mxu0 0.0
        %602 = vmatpush1.xpose.msra.mxu0 0.0
        %603 = vmatprep.subr.mxu0 0.0
        %604 = vmatpush1.xpose.msra.mxu0 0.0
        %605 = vmatprep.subr.mxu0 0.0
        %606 = vmatpush1.xpose.msra.mxu0 0.0
        %607 = vmatprep.subr.mxu0 0.0
        %608 = vmatpush1.xpose.msra.mxu0 0.0
        %609 = vmatprep.subr.mxu0 0.0
        %610 = vmatpush1.xpose.msra.mxu0 0.0
        %611 = vmatprep.subr.mxu0 0.0
        %612 = vmatpush1.xpose.msra.mxu0 0.0
        %613 = vmatprep.subr.mxu0 0.0
        %614 = vmatpush1.xpose.msra.mxu0 0.0
        %615 = vmatprep.subr.mxu0 0.0
        %616 = vmatpush1.xpose.msra.mxu0 0.0
        %617 = vmatprep.subr.mxu0 0.0
        %618 = vmatpush1.xpose.msra.mxu0 0.0
        %619 = vmatprep.subr.mxu0 0.0
        %620 = vmatpush1.xpose.msra.mxu0 0.0
        %621 = vmatprep.subr.mxu0 0.0
        %622 = vmatpush1.xpose.msra.mxu0 0.0
        %623 = vmatprep.subr.mxu0 0.0
        %624 = vmatpush1.xpose.msra.mxu0 0.0
        %625 = vmatprep.subr.mxu0 0.0
        %626 = vmatpush1.xpose.msra.mxu0 0.0
        %627 = vmatprep.subr.mxu0 0.0
        %628 = vmatpush1.xpose.msra.mxu0 0.0
        %629 = vmatprep.subr.mxu0 0.0
        %630 = vmatpush1.xpose.msra.mxu0 0.0
        %631 = vmatprep.subr.mxu0 0.0
        %632 = vmatpush1.xpose.msra.mxu0 0.0
        %633 = vmatprep.subr.mxu0 0.0
        %634 = vmatpush1.xpose.msra.mxu0 0.0
        %635 = vmatprep.subr.mxu0 0.0
        %636 = vmatpush1.xpose.msra.mxu0 0.0
        %637 = vmatprep.subr.mxu0 0.0
        %638 = vmatpush1.xpose.msra.mxu0 0.0
        %639 = vmatprep.subr.mxu0 0.0
        %640 = vmatpush1.xpose.msra.mxu0 0.0
        %641 = vmatprep.subr.mxu0 0.0
        %642 = vmatpush1.xpose.msra.mxu0 0.0
        %643 = vmatprep.subr.mxu0 0.0
        %644 = vmatpush1.xpose.msra.mxu0 0.0
        %645 = vmatprep.subr.mxu0 0.0
        %646 = vmatpush1.xpose.msra.mxu0 0.0
        %647 = vmatprep.subr.mxu0 0.0
        %648 = vmatpush1.xpose.msra.mxu0 0.0
        %649 = vmatprep.subr.mxu0 0.0
        %650 = vmatpush1.xpose.msra.mxu0 0.0
        %651 = vmatprep.subr.mxu0 0.0
        %652 = vmatpush1.xpose.msra.mxu0 0.0
        %653 = vmatprep.subr.mxu0 0.0
        %654 = vmatpush1.xpose.msra.mxu0 0.0
        %655 = vmatprep.subr.mxu0 0.0
        %656 = vmatpush1.xpose.msra.mxu0 0.0
        %657 = vmatprep.subr.mxu0 0.0
        %658 = vmatpush1.xpose.msra.mxu0 0.0
        %659 = vmatprep.subr.mxu0 0.0
        %660 = vmatpush1.xpose.msra.mxu0 0.0
        %661 = vmatprep.mubr.f32.mxu0 0.0
        %662 = vmatmul.mubr.f32.gmra.mrb[0].mxu0 %v592
        %v663 = vpop.f32.mrb[0].mxu0
        %v664 = vadd.f32 0.0, %v663
        %v665 = vpop.f32.mrb[0].mxu0
        %666 = vdwg.mxu0
        %vm667 = vcmask 64512
        %v668 = vsel %vm667, %v664, -inf
        %669 = vmax.xlane.f32.xlu0 %v668
        %v670 = vpop.xlane.xlu0 %669
        %v671 = vsub.f32 %v664, %v670
        %v672 = vmul.f32 %v671, 1.442695
        %v673 = vpow.pop %v672
        %v674 = vsel %vm667, %v673, 0.0
        %675 = vadd.xlane.f32.xlu0 %v674
        %v676 = vpop.xlane.xlu0 %675
        %v677 = vrcp.pop %v676
        %v678 = vmul.f32 %v673, %v677
        %679 = vst.msk [vmem:[%s362] sm:$0xff] %vm667, %v678
        %v681 = vsel %vm667, %v678, 0
        %683 = vmatprep.subr.mxu0 0.0
        %684 = vmatpush1.msra.mxu0 %v587
        %685 = vmatprep.subr.mxu0 0.0
        %686 = vmatpush1.msra.mxu0 0.0
        %687 = vmatprep.subr.mxu0 0.0
        %688 = vmatpush1.msra.mxu0 0.0
        %689 = vmatprep.subr.mxu0 0.0
        %690 = vmatpush1.msra.mxu0 0.0
        %691 = vmatprep.subr.mxu0 0.0
        %692 = vmatpush1.msra.mxu0 0.0
        %693 = vmatprep.subr.mxu0 0.0
        %694 = vmatpush1.msra.mxu0 0.0
        %695 = vmatprep.subr.mxu0 0.0
        %696 = vmatpush1.msra.mxu0 0.0
        %697 = vmatprep.subr.mxu0 0.0
        %698 = vmatpush1.msra.mxu0 0.0
        %699 = vmatprep.subr.mxu0 0.0
        %700 = vmatpush1.msra.mxu0 0.0
        %701 = vmatprep.subr.mxu0 0.0
        %702 = vmatpush1.msra.mxu0 0.0
        %703 = vmatprep.subr.mxu0 0.0
        %704 = vmatpush1.msra.mxu0 0.0
        %705 = vmatprep.subr.mxu0 0.0
        %706 = vmatpush1.msra.mxu0 0.0
        %707 = vmatprep.subr.mxu0 0.0
        %708 = vmatpush1.msra.mxu0 0.0
        %709 = vmatprep.subr.mxu0 0.0
        %710 = vmatpush1.msra.mxu0 0.0
        %711 = vmatprep.subr.mxu0 0.0
        %712 = vmatpush1.msra.mxu0 0.0
        %713 = vmatprep.subr.mxu0 0.0
        %714 = vmatpush1.msra.mxu0 0.0
        %715 = vmatprep.subr.mxu0 0.0
        %716 = vmatpush1.msra.mxu0 0.0
        %717 = vmatprep.subr.mxu0 0.0
        %718 = vmatpush1.msra.mxu0 0.0
        %719 = vmatprep.subr.mxu0 0.0
        %720 = vmatpush1.msra.mxu0 0.0
        %721 = vmatprep.subr.mxu0 0.0
        %722 = vmatpush1.msra.mxu0 0.0
        %723 = vmatprep.subr.mxu0 0.0
        %724 = vmatpush1.msra.mxu0 0.0
        %725 = vmatprep.subr.mxu0 0.0
        %726 = vmatpush1.msra.mxu0 0.0
        %727 = vmatprep.subr.mxu0 0.0
        %728 = vmatpush1.msra.mxu0 0.0
        %729 = vmatprep.subr.mxu0 0.0
        %730 = vmatpush1.msra.mxu0 0.0
        %731 = vmatprep.subr.mxu0 0.0
        %732 = vmatpush1.msra.mxu0 0.0
        %733 = vmatprep.subr.mxu0 0.0
        %734 = vmatpush1.msra.mxu0 0.0
        %735 = vmatprep.subr.mxu0 0.0
        %736 = vmatpush1.msra.mxu0 0.0
        %737 = vmatprep.subr.mxu0 0.0
        %738 = vmatpush1.msra.mxu0 0.0
        %739 = vmatprep.subr.mxu0 0.0
        %740 = vmatpush1.msra.mxu0 0.0
        %741 = vmatprep.subr.mxu0 0.0
        %742 = vmatpush1.msra.mxu0 0.0
        %743 = vmatprep.subr.mxu0 0.0
        %744 = vmatpush1.msra.mxu0 0.0
        %745 = vmatprep.subr.mxu0 0.0
        %746 = vmatpush1.msra.mxu0 0.0
        %747 = vmatprep.mubr.f32.mxu0 0.0
        %748 = vmatmul.mubr.f32.gmra.mrb[0].mxu0 %v681
        %v749 = vpop.f32.mrb[0].mxu0
        %v750 = vadd.f32 0.0, %v749
        %v751 = vpop.f32.mrb[0].mxu0
        %752 = vdwg.mxu0
        %753 = vst.msk [vmem:[#allocation2] sm:$0xff] %vm590, %v750
        %754 = vrot.lane.b32.xlu0 %v439, 124
        %v755 = vpop.permute.xlu0 %754
        %756 = vrot.lane.b32.xlu0 %v513, 124
        %v757 = vpop.permute.xlu0 %756
        %v758 = vsel %vm590, %v755, 0
        %v760 = vsel %vm590, %v757, 0
        %762 = vmatprep.subr.mxu0 0.0
        %763 = vmatpush1.xpose.msra.mxu0 %v760
        %764 = vmatprep.subr.mxu0 0.0
        %765 = vmatpush1.xpose.msra.mxu0 0.0
        %766 = vmatprep.subr.mxu0 0.0
        %767 = vmatpush1.xpose.msra.mxu0 0.0
        %768 = vmatprep.subr.mxu0 0.0
        %769 = vmatpush1.xpose.msra.mxu0 0.0
        %770 = vmatprep.subr.mxu0 0.0
        %771 = vmatpush1.xpose.msra.mxu0 0.0
        %772 = vmatprep.subr.mxu0 0.0
        %773 = vmatpush1.xpose.msra.mxu0 0.0
        %774 = vmatprep.subr.mxu0 0.0
        %775 = vmatpush1.xpose.msra.mxu0 0.0
        %776 = vmatprep.subr.mxu0 0.0
        %777 = vmatpush1.xpose.msra.mxu0 0.0
        %778 = vmatprep.subr.mxu0 0.0
        %779 = vmatpush1.xpose.msra.mxu0 0.0
        %780 = vmatprep.subr.mxu0 0.0
        %781 = vmatpush1.xpose.msra.mxu0 0.0
        %782 = vmatprep.subr.mxu0 0.0
        %783 = vmatpush1.xpose.msra.mxu0 0.0
        %784 = vmatprep.subr.mxu0 0.0
        %785 = vmatpush1.xpose.msra.mxu0 0.0
        %786 = vmatprep.subr.mxu0 0.0
        %787 = vmatpush1.xpose.msra.mxu0 0.0
        %788 = vmatprep.subr.mxu0 0.0
        %789 = vmatpush1.xpose.msra.mxu0 0.0
        %790 = vmatprep.subr.mxu0 0.0
        %791 = vmatpush1.xpose.msra.mxu0 0.0
        %792 = vmatprep.subr.mxu0 0.0
        %793 = vmatpush1.xpose.msra.mxu0 0.0
        %794 = vmatprep.subr.mxu0 0.0
        %795 = vmatpush1.xpose.msra.mxu0 0.0
        %796 = vmatprep.subr.mxu0 0.0
        %797 = vmatpush1.xpose.msra.mxu0 0.0
        %798 = vmatprep.subr.mxu0 0.0
        %799 = vmatpush1.xpose.msra.mxu0 0.0
        %800 = vmatprep.subr.mxu0 0.0
        %801 = vmatpush1.xpose.msra.mxu0 0.0
        %802 = vmatprep.subr.mxu0 0.0
        %803 = vmatpush1.xpose.msra.mxu0 0.0
        %804 = vmatprep.subr.mxu0 0.0
        %805 = vmatpush1.xpose.msra.mxu0 0.0
        %806 = vmatprep.subr.mxu0 0.0
        %807 = vmatpush1.xpose.msra.mxu0 0.0
        %808 = vmatprep.subr.mxu0 0.0
        %809 = vmatpush1.xpose.msra.mxu0 0.0
        %810 = vmatprep.subr.mxu0 0.0
        %811 = vmatpush1.xpose.msra.mxu0 0.0
        %812 = vmatprep.subr.mxu0 0.0
        %813 = vmatpush1.xpose.msra.mxu0 0.0
        %814 = vmatprep.subr.mxu0 0.0
        %815 = vmatpush1.xpose.msra.mxu0 0.0
        %816 = vmatprep.subr.mxu0 0.0
        %817 = vmatpush1.xpose.msra.mxu0 0.0
        %818 = vmatprep.subr.mxu0 0.0
        %819 = vmatpush1.xpose.msra.mxu0 0.0
        %820 = vmatprep.subr.mxu0 0.0
        %821 = vmatpush1.xpose.msra.mxu0 0.0
        %822 = vmatprep.subr.mxu0 0.0
        %823 = vmatpush1.xpose.msra.mxu0 0.0
        %824 = vmatprep.subr.mxu0 0.0
        %825 = vmatpush1.xpose.msra.mxu0 0.0
        %826 = vmatprep.mubr.f32.mxu0 0.0
        %827 = vmatmul.mubr.f32.gmra.mrb[0].mxu0 %v758
        %v828 = vpop.f32.mrb[0].mxu0
        %v829 = vadd.f32 0.0, %v828
        %v830 = vpop.f32.mrb[0].mxu0
        %831 = vdwg.mxu0
        %v832 = vsel %vm667, %v829, -inf
        %833 = vmax.xlane.f32.xlu0 %v832
        %v834 = vpop.xlane.xlu0 %833
        %v835 = vsub.f32 %v829, %v834
        %v836 = vmul.f32 %v835, 1.442695
        %v837 = vpow.pop %v836
        %v838 = vsel %vm667, %v837, 0.0
        %839 = vadd.xlane.f32.xlu0 %v838
        %v840 = vpop.xlane.xlu0 %839
        %v841 = vrcp.pop %v840
        %v842 = vmul.f32 %v837, %v841
        %s843 = scalar_lea.vmem %s362, 8 [#allocation13]
        %844 = vst.msk [vmem:[%s843] sm:$0xff] %vm667, %v842
        %846 = vrot.lane.b32.xlu0 %v587, 124
        %v847 = vpop.permute.xlu0 %846
        %v850 = vsel %vm667, %v842, 0
        %852 = vmatprep.subr.mxu0 0.0
        %853 = vmatpush1.msra.mxu0 %v847
        %854 = vmatprep.subr.mxu0 0.0
        %855 = vmatpush1.msra.mxu0 0.0
        %856 = vmatprep.subr.mxu0 0.0
        %857 = vmatpush1.msra.mxu0 0.0
        %858 = vmatprep.subr.mxu0 0.0
        %859 = vmatpush1.msra.mxu0 0.0
        %860 = vmatprep.subr.mxu0 0.0
        %861 = vmatpush1.msra.mxu0 0.0
        %862 = vmatprep.subr.mxu0 0.0
        %863 = vmatpush1.msra.mxu0 0.0
        %864 = vmatprep.subr.mxu0 0.0
        %865 = vmatpush1.msra.mxu0 0.0
        %866 = vmatprep.subr.mxu0 0.0
        %867 = vmatpush1.msra.mxu0 0.0
        %868 = vmatprep.subr.mxu0 0.0
        %869 = vmatpush1.msra.mxu0 0.0
        %870 = vmatprep.subr.mxu0 0.0
        %871 = vmatpush1.msra.mxu0 0.0
        %872 = vmatprep.subr.mxu0 0.0
        %873 = vmatpush1.msra.mxu0 0.0
        %874 = vmatprep.subr.mxu0 0.0
        %875 = vmatpush1.msra.mxu0 0.0
        %876 = vmatprep.subr.mxu0 0.0
        %877 = vmatpush1.msra.mxu0 0.0
        %878 = vmatprep.subr.mxu0 0.0
        %879 = vmatpush1.msra.mxu0 0.0
        %880 = vmatprep.subr.mxu0 0.0
        %881 = vmatpush1.msra.mxu0 0.0
        %882 = vmatprep.subr.mxu0 0.0
        %883 = vmatpush1.msra.mxu0 0.0
        %884 = vmatprep.subr.mxu0 0.0
        %885 = vmatpush1.msra.mxu0 0.0
        %886 = vmatprep.subr.mxu0 0.0
        %887 = vmatpush1.msra.mxu0 0.0
        %888 = vmatprep.subr.mxu0 0.0
        %889 = vmatpush1.msra.mxu0 0.0
        %890 = vmatprep.subr.mxu0 0.0
        %891 = vmatpush1.msra.mxu0 0.0
        %892 = vmatprep.subr.mxu0 0.0
        %893 = vmatpush1.msra.mxu0 0.0
        %894 = vmatprep.subr.mxu0 0.0
        %895 = vmatpush1.msra.mxu0 0.0
        %896 = vmatprep.subr.mxu0 0.0
        %897 = vmatpush1.msra.mxu0 0.0
        %898 = vmatprep.subr.mxu0 0.0
        %899 = vmatpush1.msra.mxu0 0.0
        %900 = vmatprep.subr.mxu0 0.0
        %901 = vmatpush1.msra.mxu0 0.0
        %902 = vmatprep.subr.mxu0 0.0
        %903 = vmatpush1.msra.mxu0 0.0
        %904 = vmatprep.subr.mxu0 0.0
        %905 = vmatpush1.msra.mxu0 0.0
        %906 = vmatprep.subr.mxu0 0.0
        %907 = vmatpush1.msra.mxu0 0.0
        %908 = vmatprep.subr.mxu0 0.0
        %909 = vmatpush1.msra.mxu0 0.0
        %910 = vmatprep.subr.mxu0 0.0
        %911 = vmatpush1.msra.mxu0 0.0
        %912 = vmatprep.subr.mxu0 0.0
        %913 = vmatpush1.msra.mxu0 0.0
        %914 = vmatprep.subr.mxu0 0.0
        %915 = vmatpush1.msra.mxu0 0.0
        %916 = vmatprep.mubr.f32.mxu0 0.0
        %917 = vmatmul.mubr.f32.gmra.mrb[0].mxu0 %v850
        %v918 = vpop.f32.mrb[0].mxu0
        %v919 = vadd.f32 0.0, %v918
        %v920 = vpop.f32.mrb[0].mxu0
        %921 = vdwg.mxu0
        %923 = vrot.lane.b32.xlu0 %v919, 4
        %v924 = vpop.permute.xlu0 %923
        %vm926 = vcmask 64544
        %927 = vst.msk [vmem:[#allocation2] sm:$0xff] %vm926, %v924
        %928 = vrot.lane.b32.xlu0 %v439, 120
        %v929 = vpop.permute.xlu0 %928
        %930 = vrot.lane.b32.xlu0 %v513, 120
        %v931 = vpop.permute.xlu0 %930
        %v932 = vsel %vm590, %v929, 0
        %v934 = vsel %vm590, %v931, 0
        %936 = vmatprep.subr.mxu0 0.0
        %937 = vmatpush1.xpose.msra.mxu0 %v934
        %938 = vmatprep.subr.mxu0 0.0
        %939 = vmatpush1.xpose.msra.mxu0 0.0
        %940 = vmatprep.subr.mxu0 0.0
        %941 = vmatpush1.xpose.msra.mxu0 0.0
        %942 = vmatprep.subr.mxu0 0.0
        %943 = vmatpush1.xpose.msra.mxu0 0.0
        %944 = vmatprep.subr.mxu0 0.0
        %945 = vmatpush1.xpose.msra.mxu0 0.0
        %946 = vmatprep.subr.mxu0 0.0
        %947 = vmatpush1.xpose.msra.mxu0 0.0
        %948 = vmatprep.subr.mxu0 0.0
        %949 = vmatpush1.xpose.msra.mxu0 0.0
        %950 = vmatprep.subr.mxu0 0.0
        %951 = vmatpush1.xpose.msra.mxu0 0.0
        %952 = vmatprep.subr.mxu0 0.0
        %953 = vmatpush1.xpose.msra.mxu0 0.0
        %954 = vmatprep.subr.mxu0 0.0
        %955 = vmatpush1.xpose.msra.mxu0 0.0
        %956 = vmatprep.subr.mxu0 0.0
        %957 = vmatpush1.xpose.msra.mxu0 0.0
        %958 = vmatprep.subr.mxu0 0.0
        %959 = vmatpush1.xpose.msra.mxu0 0.0
        %960 = vmatprep.subr.mxu0 0.0
        %961 = vmatpush1.xpose.msra.mxu0 0.0
        %962 = vmatprep.subr.mxu0 0.0
        %963 = vmatpush1.xpose.msra.mxu0 0.0
        %964 = vmatprep.subr.mxu0 0.0
        %965 = vmatpush1.xpose.msra.mxu0 0.0
        %966 = vmatprep.subr.mxu0 0.0
        %967 = vmatpush1.xpose.msra.mxu0 0.0
        %968 = vmatprep.subr.mxu0 0.0
        %969 = vmatpush1.xpose.msra.mxu0 0.0
        %970 = vmatprep.subr.mxu0 0.0
        %971 = vmatpush1.xpose.msra.mxu0 0.0
        %972 = vmatprep.subr.mxu0 0.0
        %973 = vmatpush1.xpose.msra.mxu0 0.0
        %974 = vmatprep.subr.mxu0 0.0
        %975 = vmatpush1.xpose.msra.mxu0 0.0
        %976 = vmatprep.subr.mxu0 0.0
        %977 = vmatpush1.xpose.msra.mxu0 0.0
        %978 = vmatprep.subr.mxu0 0.0
        %979 = vmatpush1.xpose.msra.mxu0 0.0
        %980 = vmatprep.subr.mxu0 0.0
        %981 = vmatpush1.xpose.msra.mxu0 0.0
        %982 = vmatprep.subr.mxu0 0.0
        %983 = vmatpush1.xpose.msra.mxu0 0.0
        %984 = vmatprep.subr.mxu0 0.0
        %985 = vmatpush1.xpose.msra.mxu0 0.0
        %986 = vmatprep.subr.mxu0 0.0
        %987 = vmatpush1.xpose.msra.mxu0 0.0
        %988 = vmatprep.subr.mxu0 0.0
        %989 = vmatpush1.xpose.msra.mxu0 0.0
        %990 = vmatprep.subr.mxu0 0.0
        %991 = vmatpush1.xpose.msra.mxu0 0.0
        %992 = vmatprep.subr.mxu0 0.0
        %993 = vmatpush1.xpose.msra.mxu0 0.0
        %994 = vmatprep.subr.mxu0 0.0
        %995 = vmatpush1.xpose.msra.mxu0 0.0
        %996 = vmatprep.subr.mxu0 0.0
        %997 = vmatpush1.xpose.msra.mxu0 0.0
        %998 = vmatprep.subr.mxu0 0.0
        %999 = vmatpush1.xpose.msra.mxu0 0.0
        %1000 = vmatprep.mubr.f32.mxu0 0.0
        %1001 = vmatmul.mubr.f32.gmra.mrb[0].mxu0 %v932
        %v1002 = vpop.f32.mrb[0].mxu0
        %v1003 = vadd.f32 0.0, %v1002
        %v1004 = vpop.f32.mrb[0].mxu0
        %1005 = vdwg.mxu0
        %v1006 = vsel %vm667, %v1003, -inf
        %1007 = vmax.xlane.f32.xlu0 %v1006
        %v1008 = vpop.xlane.xlu0 %1007
        %v1009 = vsub.f32 %v1003, %v1008
        %v1010 = vmul.f32 %v1009, 1.442695
        %v1011 = vpow.pop %v1010
        %v1012 = vsel %vm667, %v1011, 0.0
        %1013 = vadd.xlane.f32.xlu0 %v1012
        %v1014 = vpop.xlane.xlu0 %1013
        %v1015 = vrcp.pop %v1014
        %v1016 = vmul.f32 %v1011, %v1015
        %s1017 = scalar_lea.vmem %s362, 16 [#allocation13]
        %1018 = vst.msk [vmem:[%s1017] sm:$0xff] %vm667, %v1016
        %1019 = vrot.lane.b32.xlu0 %v587, 120
        %v1020 = vpop.permute.xlu0 %1019
        %v1023 = vsel %vm667, %v1016, 0
        %1025 = vmatprep.subr.mxu0 0.0
        %1026 = vmatpush1.msra.mxu0 %v1020
        %1027 = vmatprep.subr.mxu0 0.0
        %1028 = vmatpush1.msra.mxu0 0.0
        %1029 = vmatprep.subr.mxu0 0.0
        %1030 = vmatpush1.msra.mxu0 0.0
        %1031 = vmatprep.subr.mxu0 0.0
        %1032 = vmatpush1.msra.mxu0 0.0
        %1033 = vmatprep.subr.mxu0 0.0
        %1034 = vmatpush1.msra.mxu0 0.0
        %1035 = vmatprep.subr.mxu0 0.0
        %1036 = vmatpush1.msra.mxu0 0.0
        %1037 = vmatprep.subr.mxu0 0.0
        %1038 = vmatpush1.msra.mxu0 0.0
        %1039 = vmatprep.subr.mxu0 0.0
        %1040 = vmatpush1.msra.mxu0 0.0
        %1041 = vmatprep.subr.mxu0 0.0
        %1042 = vmatpush1.msra.mxu0 0.0
        %1043 = vmatprep.subr.mxu0 0.0
        %1044 = vmatpush1.msra.mxu0 0.0
        %1045 = vmatprep.subr.mxu0 0.0
        %1046 = vmatpush1.msra.mxu0 0.0
        %1047 = vmatprep.subr.mxu0 0.0
        %1048 = vmatpush1.msra.mxu0 0.0
        %1049 = vmatprep.subr.mxu0 0.0
        %1050 = vmatpush1.msra.mxu0 0.0
        %1051 = vmatprep.subr.mxu0 0.0
        %1052 = vmatpush1.msra.mxu0 0.0
        %1053 = vmatprep.subr.mxu0 0.0
        %1054 = vmatpush1.msra.mxu0 0.0
        %1055 = vmatprep.subr.mxu0 0.0
        %1056 = vmatpush1.msra.mxu0 0.0
        %1057 = vmatprep.subr.mxu0 0.0
        %1058 = vmatpush1.msra.mxu0 0.0
        %1059 = vmatprep.subr.mxu0 0.0
        %1060 = vmatpush1.msra.mxu0 0.0
        %1061 = vmatprep.subr.mxu0 0.0
        %1062 = vmatpush1.msra.mxu0 0.0
        %1063 = vmatprep.subr.mxu0 0.0
        %1064 = vmatpush1.msra.mxu0 0.0
        %1065 = vmatprep.subr.mxu0 0.0
        %1066 = vmatpush1.msra.mxu0 0.0
        %1067 = vmatprep.subr.mxu0 0.0
        %1068 = vmatpush1.msra.mxu0 0.0
        %1069 = vmatprep.subr.mxu0 0.0
        %1070 = vmatpush1.msra.mxu0 0.0
        %1071 = vmatprep.subr.mxu0 0.0
        %1072 = vmatpush1.msra.mxu0 0.0
        %1073 = vmatprep.subr.mxu0 0.0
        %1074 = vmatpush1.msra.mxu0 0.0
        %1075 = vmatprep.subr.mxu0 0.0
        %1076 = vmatpush1.msra.mxu0 0.0
        %1077 = vmatprep.subr.mxu0 0.0
        %1078 = vmatpush1.msra.mxu0 0.0
        %1079 = vmatprep.subr.mxu0 0.0
        %1080 = vmatpush1.msra.mxu0 0.0
        %1081 = vmatprep.subr.mxu0 0.0
        %1082 = vmatpush1.msra.mxu0 0.0
        %1083 = vmatprep.subr.mxu0 0.0
        %1084 = vmatpush1.msra.mxu0 0.0
        %1085 = vmatprep.subr.mxu0 0.0
        %1086 = vmatpush1.msra.mxu0 0.0
        %1087 = vmatprep.subr.mxu0 0.0
        %1088 = vmatpush1.msra.mxu0 0.0
        %1089 = vmatprep.mubr.f32.mxu0 0.0
        %1090 = vmatmul.mubr.f32.gmra.mrb[0].mxu0 %v1023
        %v1091 = vpop.f32.mrb[0].mxu0
        %v1092 = vadd.f32 0.0, %v1091
        %v1093 = vpop.f32.mrb[0].mxu0
        %1094 = vdwg.mxu0
        %1096 = vrot.lane.b32.xlu0 %v1092, 8
        %v1097 = vpop.permute.xlu0 %1096
        %vm1099 = vcmask 97344
        %1100 = vst.msk [vmem:[#allocation2] sm:$0xff] %vm1099, %v1097
        %1101 = vrot.lane.b32.xlu0 %v439, 116
        %v1102 = vpop.permute.xlu0 %1101
        %1103 = vrot.lane.b32.xlu0 %v513, 116
        %v1104 = vpop.permute.xlu0 %1103
        %v1105 = vsel %vm590, %v1102, 0
        %v1107 = vsel %vm590, %v1104, 0
        %1109 = vmatprep.subr.mxu0 0.0
        %1110 = vmatpush1.xpose.msra.mxu0 %v1107
        %1111 = vmatprep.subr.mxu0 0.0
        %1112 = vmatpush1.xpose.msra.mxu0 0.0
        %1113 = vmatprep.subr.mxu0 0.0
        %1114 = vmatpush1.xpose.msra.mxu0 0.0
        %1115 = vmatprep.subr.mxu0 0.0
        %1116 = vmatpush1.xpose.msra.mxu0 0.0
        %1117 = vmatprep.subr.mxu0 0.0
        %1118 = vmatpush1.xpose.msra.mxu0 0.0
        %1119 = vmatprep.subr.mxu0 0.0
        %1120 = vmatpush1.xpose.msra.mxu0 0.0
        %1121 = vmatprep.subr.mxu0 0.0
        %1122 = vmatpush1.xpose.msra.mxu0 0.0
        %1123 = vmatprep.subr.mxu0 0.0
        %1124 = vmatpush1.xpose.msra.mxu0 0.0
        %1125 = vmatprep.subr.mxu0 0.0
        %1126 = vmatpush1.xpose.msra.mxu0 0.0
        %1127 = vmatprep.subr.mxu0 0.0
        %1128 = vmatpush1.xpose.msra.mxu0 0.0
        %1129 = vmatprep.subr.mxu0 0.0
        %1130 = vmatpush1.xpose.msra.mxu0 0.0
        %1131 = vmatprep.subr.mxu0 0.0
        %1132 = vmatpush1.xpose.msra.mxu0 0.0
        %1133 = vmatprep.subr.mxu0 0.0
        %1134 = vmatpush1.xpose.msra.mxu0 0.0
        %1135 = vmatprep.subr.mxu0 0.0
        %1136 = vmatpush1.xpose.msra.mxu0 0.0
        %1137 = vmatprep.subr.mxu0 0.0
        %1138 = vmatpush1.xpose.msra.mxu0 0.0
        %1139 = vmatprep.subr.mxu0 0.0
        %1140 = vmatpush1.xpose.msra.mxu0 0.0
        %1141 = vmatprep.subr.mxu0 0.0
        %1142 = vmatpush1.xpose.msra.mxu0 0.0
        %1143 = vmatprep.subr.mxu0 0.0
        %1144 = vmatpush1.xpose.msra.mxu0 0.0
        %1145 = vmatprep.subr.mxu0 0.0
        %1146 = vmatpush1.xpose.msra.mxu0 0.0
        %1147 = vmatprep.subr.mxu0 0.0
        %1148 = vmatpush1.xpose.msra.mxu0 0.0
        %1149 = vmatprep.subr.mxu0 0.0
        %1150 = vmatpush1.xpose.msra.mxu0 0.0
        %1151 = vmatprep.subr.mxu0 0.0
        %1152 = vmatpush1.xpose.msra.mxu0 0.0
        %1153 = vmatprep.subr.mxu0 0.0
        %1154 = vmatpush1.xpose.msra.mxu0 0.0
        %1155 = vmatprep.subr.mxu0 0.0
        %1156 = vmatpush1.xpose.msra.mxu0 0.0
        %1157 = vmatprep.subr.mxu0 0.0
        %1158 = vmatpush1.xpose.msra.mxu0 0.0
        %1159 = vmatprep.subr.mxu0 0.0
        %1160 = vmatpush1.xpose.msra.mxu0 0.0
        %1161 = vmatprep.subr.mxu0 0.0
        %1162 = vmatpush1.xpose.msra.mxu0 0.0
        %1163 = vmatprep.subr.mxu0 0.0
        %1164 = vmatpush1.xpose.msra.mxu0 0.0
        %1165 = vmatprep.subr.mxu0 0.0
        %1166 = vmatpush1.xpose.msra.mxu0 0.0
        %1167 = vmatprep.subr.mxu0 0.0
        %1168 = vmatpush1.xpose.msra.mxu0 0.0
        %1169 = vmatprep.subr.mxu0 0.0
        %1170 = vmatpush1.xpose.msra.mxu0 0.0
        %1171 = vmatprep.subr.mxu0 0.0
        %1172 = vmatpush1.xpose.msra.mxu0 0.0
        %1173 = vmatprep.mubr.f32.mxu0 0.0
        %1174 = vmatmul.mubr.f32.gmra.mrb[0].mxu0 %v1105
        %v1175 = vpop.f32.mrb[0].mxu0
        %v1176 = vadd.f32 0.0, %v1175
        %v1177 = vpop.f32.mrb[0].mxu0
        %1178 = vdwg.mxu0
        %v1179 = vsel %vm667, %v1176, -inf
        %1180 = vmax.xlane.f32.xlu0 %v1179
        %v1181 = vpop.xlane.xlu0 %1180
        %v1182 = vsub.f32 %v1176, %v1181
        %v1183 = vmul.f32 %v1182, 1.442695
        %v1184 = vpow.pop %v1183
        %v1185 = vsel %vm667, %v1184, 0.0
        %1186 = vadd.xlane.f32.xlu0 %v1185
        %v1187 = vpop.xlane.xlu0 %1186
        %v1188 = vrcp.pop %v1187
        %v1189 = vmul.f32 %v1184, %v1188
        %s1190 = scalar_lea.vmem %s362, 24 [#allocation13]
        %1191 = vst.msk [vmem:[%s1190] sm:$0xff] %vm667, %v1189
        %1192 = vrot.lane.b32.xlu0 %v587, 116
        %v1193 = vpop.permute.xlu0 %1192
        %v1196 = vsel %vm667, %v1189, 0
        %1198 = vmatprep.subr.mxu0 0.0
        %1199 = vmatpush1.msra.mxu0 %v1193
        %1200 = vmatprep.subr.mxu0 0.0
        %1201 = vmatpush1.msra.mxu0 0.0
        %1202 = vmatprep.subr.mxu0 0.0
        %1203 = vmatpush1.msra.mxu0 0.0
        %1204 = vmatprep.subr.mxu0 0.0
        %1205 = vmatpush1.msra.mxu0 0.0
        %1206 = vmatprep.subr.mxu0 0.0
        %1207 = vmatpush1.msra.mxu0 0.0
        %1208 = vmatprep.subr.mxu0 0.0
        %1209 = vmatpush1.msra.mxu0 0.0
        %1210 = vmatprep.subr.mxu0 0.0
        %1211 = vmatpush1.msra.mxu0 0.0
        %1212 = vmatprep.subr.mxu0 0.0
        %1213 = vmatpush1.msra.mxu0 0.0
        %1214 = vmatprep.subr.mxu0 0.0
        %1215 = vmatpush1.msra.mxu0 0.0
        %1216 = vmatprep.subr.mxu0 0.0
        %1217 = vmatpush1.msra.mxu0 0.0
        %1218 = vmatprep.subr.mxu0 0.0
        %1219 = vmatpush1.msra.mxu0 0.0
        %1220 = vmatprep.subr.mxu0 0.0
        %1221 = vmatpush1.msra.mxu0 0.0
        %1222 = vmatprep.subr.mxu0 0.0
        %1223 = vmatpush1.msra.mxu0 0.0
        %1224 = vmatprep.subr.mxu0 0.0
        %1225 = vmatpush1.msra.mxu0 0.0
        %1226 = vmatprep.subr.mxu0 0.0
        %1227 = vmatpush1.msra.mxu0 0.0
        %1228 = vmatprep.subr.mxu0 0.0
        %1229 = vmatpush1.msra.mxu0 0.0
        %1230 = vmatprep.subr.mxu0 0.0
        %1231 = vmatpush1.msra.mxu0 0.0
        %1232 = vmatprep.subr.mxu0 0.0
        %1233 = vmatpush1.msra.mxu0 0.0
        %1234 = vmatprep.subr.mxu0 0.0
        %1235 = vmatpush1.msra.mxu0 0.0
        %1236 = vmatprep.subr.mxu0 0.0
        %1237 = vmatpush1.msra.mxu0 0.0
        %1238 = vmatprep.subr.mxu0 0.0
        %1239 = vmatpush1.msra.mxu0 0.0
        %1240 = vmatprep.subr.mxu0 0.0
        %1241 = vmatpush1.msra.mxu0 0.0
        %1242 = vmatprep.subr.mxu0 0.0
        %1243 = vmatpush1.msra.mxu0 0.0
        %1244 = vmatprep.subr.mxu0 0.0
        %1245 = vmatpush1.msra.mxu0 0.0
        %1246 = vmatprep.subr.mxu0 0.0
        %1247 = vmatpush1.msra.mxu0 0.0
        %1248 = vmatprep.subr.mxu0 0.0
        %1249 = vmatpush1.msra.mxu0 0.0
        %1250 = vmatprep.subr.mxu0 0.0
        %1251 = vmatpush1.msra.mxu0 0.0
        %1252 = vmatprep.subr.mxu0 0.0
        %1253 = vmatpush1.msra.mxu0 0.0
        %1254 = vmatprep.subr.mxu0 0.0
        %1255 = vmatpush1.msra.mxu0 0.0
        %1256 = vmatprep.subr.mxu0 0.0
        %1257 = vmatpush1.msra.mxu0 0.0
        %1258 = vmatprep.subr.mxu0 0.0
        %1259 = vmatpush1.msra.mxu0 0.0
        %1260 = vmatprep.subr.mxu0 0.0
        %1261 = vmatpush1.msra.mxu0 0.0
        %1262 = vmatprep.mubr.f32.mxu0 0.0
        %1263 = vmatmul.mubr.f32.gmra.mrb[0].mxu0 %v1196
        %v1264 = vpop.f32.mrb[0].mxu0
        %v1265 = vadd.f32 0.0, %v1264
        %v1266 = vpop.f32.mrb[0].mxu0
        %1267 = vdwg.mxu0
        %1269 = vrot.lane.b32.xlu0 %v1265, 12
        %v1270 = vpop.permute.xlu0 %1269
        %vm1272 = vcmask 130144
        %1273 = vst.msk [vmem:[#allocation2] sm:$0xff] %vm1272, %v1270
        %1274 = vrot.lane.b32.xlu0 %v439, 112
        %v1275 = vpop.permute.xlu0 %1274
        %1276 = vrot.lane.b32.xlu0 %v513, 112
        %v1277 = vpop.permute.xlu0 %1276
        %v1278 = vsel %vm590, %v1275, 0
        %v1280 = vsel %vm590, %v1277, 0
        %1282 = vmatprep.subr.mxu0 0.0
        %1283 = vmatpush1.xpose.msra.mxu0 %v1280
        %1284 = vmatprep.subr.mxu0 0.0
        %1285 = vmatpush1.xpose.msra.mxu0 0.0
        %1286 = vmatprep.subr.mxu0 0.0
        %1287 = vmatpush1.xpose.msra.mxu0 0.0
        %1288 = vmatprep.subr.mxu0 0.0
        %1289 = vmatpush1.xpose.msra.mxu0 0.0
        %1290 = vmatprep.subr.mxu0 0.0
        %1291 = vmatpush1.xpose.msra.mxu0 0.0
        %1292 = vmatprep.subr.mxu0 0.0
        %1293 = vmatpush1.xpose.msra.mxu0 0.0
        %1294 = vmatprep.subr.mxu0 0.0
        %1295 = vmatpush1.xpose.msra.mxu0 0.0
        %1296 = vmatprep.subr.mxu0 0.0
        %1297 = vmatpush1.xpose.msra.mxu0 0.0
        %1298 = vmatprep.subr.mxu0 0.0
        %1299 = vmatpush1.xpose.msra.mxu0 0.0
        %1300 = vmatprep.subr.mxu0 0.0
        %1301 = vmatpush1.xpose.msra.mxu0 0.0
        %1302 = vmatprep.subr.mxu0 0.0
        %1303 = vmatpush1.xpose.msra.mxu0 0.0
        %1304 = vmatprep.subr.mxu0 0.0
        %1305 = vmatpush1.xpose.msra.mxu0 0.0
        %1306 = vmatprep.subr.mxu0 0.0
        %1307 = vmatpush1.xpose.msra.mxu0 0.0
        %1308 = vmatprep.subr.mxu0 0.0
        %1309 = vmatpush1.xpose.msra.mxu0 0.0
        %1310 = vmatprep.subr.mxu0 0.0
        %1311 = vmatpush1.xpose.msra.mxu0 0.0
        %1312 = vmatprep.subr.mxu0 0.0
        %1313 = vmatpush1.xpose.msra.mxu0 0.0
        %1314 = vmatprep.subr.mxu0 0.0
        %1315 = vmatpush1.xpose.msra.mxu0 0.0
        %1316 = vmatprep.subr.mxu0 0.0
        %1317 = vmatpush1.xpose.msra.mxu0 0.0
        %1318 = vmatprep.subr.mxu0 0.0
        %1319 = vmatpush1.xpose.msra.mxu0 0.0
        %1320 = vmatprep.subr.mxu0 0.0
        %1321 = vmatpush1.xpose.msra.mxu0 0.0
        %1322 = vmatprep.subr.mxu0 0.0
        %1323 = vmatpush1.xpose.msra.mxu0 0.0
        %1324 = vmatprep.subr.mxu0 0.0
        %1325 = vmatpush1.xpose.msra.mxu0 0.0
        %1326 = vmatprep.subr.mxu0 0.0
        %1327 = vmatpush1.xpose.msra.mxu0 0.0
        %1328 = vmatprep.subr.mxu0 0.0
        %1329 = vmatpush1.xpose.msra.mxu0 0.0
        %1330 = vmatprep.subr.mxu0 0.0
        %1331 = vmatpush1.xpose.msra.mxu0 0.0
        %1332 = vmatprep.subr.mxu0 0.0
        %1333 = vmatpush1.xpose.msra.mxu0 0.0
        %1334 = vmatprep.subr.mxu0 0.0
        %1335 = vmatpush1.xpose.msra.mxu0 0.0
        %1336 = vmatprep.subr.mxu0 0.0
        %1337 = vmatpush1.xpose.msra.mxu0 0.0
        %1338 = vmatprep.subr.mxu0 0.0
        %1339 = vmatpush1.xpose.msra.mxu0 0.0
        %1340 = vmatprep.subr.mxu0 0.0
        %1341 = vmatpush1.xpose.msra.mxu0 0.0
        %1342 = vmatprep.subr.mxu0 0.0
        %1343 = vmatpush1.xpose.msra.mxu0 0.0
        %1344 = vmatprep.subr.mxu0 0.0
        %1345 = vmatpush1.xpose.msra.mxu0 0.0
        %1346 = vmatprep.mubr.f32.mxu0 0.0
        %1347 = vmatmul.mubr.f32.gmra.mrb[0].mxu0 %v1278
        %v1348 = vpop.f32.mrb[0].mxu0
        %v1349 = vadd.f32 0.0, %v1348
        %v1350 = vpop.f32.mrb[0].mxu0
        %1351 = vdwg.mxu0
        %v1352 = vsel %vm667, %v1349, -inf
        %1353 = vmax.xlane.f32.xlu0 %v1352
        %v1354 = vpop.xlane.xlu0 %1353
        %v1355 = vsub.f32 %v1349, %v1354
        %v1356 = vmul.f32 %v1355, 1.442695
        %v1357 = vpow.pop %v1356
        %v1358 = vsel %vm667, %v1357, 0.0
        %1359 = vadd.xlane.f32.xlu0 %v1358
        %v1360 = vpop.xlane.xlu0 %1359
        %v1361 = vrcp.pop %v1360
        %v1362 = vmul.f32 %v1357, %v1361
        %s1363 = scalar_lea.vmem %s362, 32 [#allocation13]
        %1364 = vst.msk [vmem:[%s1363] sm:$0xff] %vm667, %v1362
        %1365 = vrot.lane.b32.xlu0 %v587, 112
        %v1366 = vpop.permute.xlu0 %1365
        %v1369 = vsel %vm667, %v1362, 0
        %1371 = vmatprep.subr.mxu0 0.0
        %1372 = vmatpush1.msra.mxu0 %v1366
        %1373 = vmatprep.subr.mxu0 0.0
        %1374 = vmatpush1.msra.mxu0 0.0
        %1375 = vmatprep.subr.mxu0 0.0
        %1376 = vmatpush1.msra.mxu0 0.0
        %1377 = vmatprep.subr.mxu0 0.0
        %1378 = vmatpush1.msra.mxu0 0.0
        %1379 = vmatprep.subr.mxu0 0.0
        %1380 = vmatpush1.msra.mxu0 0.0
        %1381 = vmatprep.subr.mxu0 0.0
        %1382 = vmatpush1.msra.mxu0 0.0
        %1383 = vmatprep.subr.mxu0 0.0
        %1384 = vmatpush1.msra.mxu0 0.0
        %1385 = vmatprep.subr.mxu0 0.0
        %1386 = vmatpush1.msra.mxu0 0.0
        %1387 = vmatprep.subr.mxu0 0.0
        %1388 = vmatpush1.msra.mxu0 0.0
        %1389 = vmatprep.subr.mxu0 0.0
        %1390 = vmatpush1.msra.mxu0 0.0
        %1391 = vmatprep.subr.mxu0 0.0
        %1392 = vmatpush1.msra.mxu0 0.0
        %1393 = vmatprep.subr.mxu0 0.0
        %1394 = vmatpush1.msra.mxu0 0.0
        %1395 = vmatprep.subr.mxu0 0.0
        %1396 = vmatpush1.msra.mxu0 0.0
        %1397 = vmatprep.subr.mxu0 0.0
        %1398 = vmatpush1.msra.mxu0 0.0
        %1399 = vmatprep.subr.mxu0 0.0
        %1400 = vmatpush1.msra.mxu0 0.0
        %1401 = vmatprep.subr.mxu0 0.0
        %1402 = vmatpush1.msra.mxu0 0.0
        %1403 = vmatprep.subr.mxu0 0.0
        %1404 = vmatpush1.msra.mxu0 0.0
        %1405 = vmatprep.subr.mxu0 0.0
        %1406 = vmatpush1.msra.mxu0 0.0
        %1407 = vmatprep.subr.mxu0 0.0
        %1408 = vmatpush1.msra.mxu0 0.0
        %1409 = vmatprep.subr.mxu0 0.0
        %1410 = vmatpush1.msra.mxu0 0.0
        %1411 = vmatprep.subr.mxu0 0.0
        %1412 = vmatpush1.msra.mxu0 0.0
        %1413 = vmatprep.subr.mxu0 0.0
        %1414 = vmatpush1.msra.mxu0 0.0
        %1415 = vmatprep.subr.mxu0 0.0
        %1416 = vmatpush1.msra.mxu0 0.0
        %1417 = vmatprep.subr.mxu0 0.0
        %1418 = vmatpush1.msra.mxu0 0.0
        %1419 = vmatprep.subr.mxu0 0.0
        %1420 = vmatpush1.msra.mxu0 0.0
        %1421 = vmatprep.subr.mxu0 0.0
        %1422 = vmatpush1.msra.mxu0 0.0
        %1423 = vmatprep.subr.mxu0 0.0
        %1424 = vmatpush1.msra.mxu0 0.0
        %1425 = vmatprep.subr.mxu0 0.0
        %1426 = vmatpush1.msra.mxu0 0.0
        %1427 = vmatprep.subr.mxu0 0.0
        %1428 = vmatpush1.msra.mxu0 0.0
        %1429 = vmatprep.subr.mxu0 0.0
        %1430 = vmatpush1.msra.mxu0 0.0
        %1431 = vmatprep.subr.mxu0 0.0
        %1432 = vmatpush1.msra.mxu0 0.0
        %1433 = vmatprep.subr.mxu0 0.0
        %1434 = vmatpush1.msra.mxu0 0.0
        %1435 = vmatprep.mubr.f32.mxu0 0.0
        %1436 = vmatmul.mubr.f32.gmra.mrb[0].mxu0 %v1369
        %v1437 = vpop.f32.mrb[0].mxu0
        %v1438 = vadd.f32 0.0, %v1437
        %v1439 = vpop.f32.mrb[0].mxu0
        %1440 = vdwg.mxu0
        %1442 = vrot.lane.b32.xlu0 %v1438, 16
        %v1443 = vpop.permute.xlu0 %1442
        %vm1445 = vcmask 162944
        %1446 = vst.msk [vmem:[#allocation2] sm:$0xff] %vm1445, %v1443
        %1447 = vrot.lane.b32.xlu0 %v439, 108
        %v1448 = vpop.permute.xlu0 %1447
        %1449 = vrot.lane.b32.xlu0 %v513, 108
        %v1450 = vpop.permute.xlu0 %1449
        %v1451 = vsel %vm590, %v1448, 0
        %v1453 = vsel %vm590, %v1450, 0
        %1455 = vmatprep.subr.mxu0 0.0
        %1456 = vmatpush1.xpose.msra.mxu0 %v1453
        %1457 = vmatprep.subr.mxu0 0.0
        %1458 = vmatpush1.xpose.msra.mxu0 0.0
        %1459 = vmatprep.subr.mxu0 0.0
        %1460 = vmatpush1.xpose.msra.mxu0 0.0
        %1461 = vmatprep.subr.mxu0 0.0
        %1462 = vmatpush1.xpose.msra.mxu0 0.0
        %1463 = vmatprep.subr.mxu0 0.0
        %1464 = vmatpush1.xpose.msra.mxu0 0.0
        %1465 = vmatprep.subr.mxu0 0.0
        %1466 = vmatpush1.xpose.msra.mxu0 0.0
        %1467 = vmatprep.subr.mxu0 0.0
        %1468 = vmatpush1.xpose.msra.mxu0 0.0
        %1469 = vmatprep.subr.mxu0 0.0
        %1470 = vmatpush1.xpose.msra.mxu0 0.0
        %1471 = vmatprep.subr.mxu0 0.0
        %1472 = vmatpush1.xpose.msra.mxu0 0.0
        %1473 = vmatprep.subr.mxu0 0.0
        %1474 = vmatpush1.xpose.msra.mxu0 0.0
        %1475 = vmatprep.subr.mxu0 0.0
        %1476 = vmatpush1.xpose.msra.mxu0 0.0
        %1477 = vmatprep.subr.mxu0 0.0
        %1478 = vmatpush1.xpose.msra.mxu0 0.0
        %1479 = vmatprep.subr.mxu0 0.0
        %1480 = vmatpush1.xpose.msra.mxu0 0.0
        %1481 = vmatprep.subr.mxu0 0.0
        %1482 = vmatpush1.xpose.msra.mxu0 0.0
        %1483 = vmatprep.subr.mxu0 0.0
        %1484 = vmatpush1.xpose.msra.mxu0 0.0
        %1485 = vmatprep.subr.mxu0 0.0
        %1486 = vmatpush1.xpose.msra.mxu0 0.0
        %1487 = vmatprep.subr.mxu0 0.0
        %1488 = vmatpush1.xpose.msra.mxu0 0.0
        %1489 = vmatprep.subr.mxu0 0.0
        %1490 = vmatpush1.xpose.msra.mxu0 0.0
        %1491 = vmatprep.subr.mxu0 0.0
        %1492 = vmatpush1.xpose.msra.mxu0 0.0
        %1493 = vmatprep.subr.mxu0 0.0
        %1494 = vmatpush1.xpose.msra.mxu0 0.0
        %1495 = vmatprep.subr.mxu0 0.0
        %1496 = vmatpush1.xpose.msra.mxu0 0.0
        %1497 = vmatprep.subr.mxu0 0.0
        %1498 = vmatpush1.xpose.msra.mxu0 0.0
        %1499 = vmatprep.subr.mxu0 0.0
        %1500 = vmatpush1.xpose.msra.mxu0 0.0
        %1501 = vmatprep.subr.mxu0 0.0
        %1502 = vmatpush1.xpose.msra.mxu0 0.0
        %1503 = vmatprep.subr.mxu0 0.0
        %1504 = vmatpush1.xpose.msra.mxu0 0.0
        %1505 = vmatprep.subr.mxu0 0.0
        %1506 = vmatpush1.xpose.msra.mxu0 0.0
        %1507 = vmatprep.subr.mxu0 0.0
        %1508 = vmatpush1.xpose.msra.mxu0 0.0
        %1509 = vmatprep.subr.mxu0 0.0
        %1510 = vmatpush1.xpose.msra.mxu0 0.0
        %1511 = vmatprep.subr.mxu0 0.0
        %1512 = vmatpush1.xpose.msra.mxu0 0.0
        %1513 = vmatprep.subr.mxu0 0.0
        %1514 = vmatpush1.xpose.msra.mxu0 0.0
        %1515 = vmatprep.subr.mxu0 0.0
        %1516 = vmatpush1.xpose.msra.mxu0 0.0
        %1517 = vmatprep.subr.mxu0 0.0
        %1518 = vmatpush1.xpose.msra.mxu0 0.0
        %1519 = vmatprep.mubr.f32.mxu0 0.0
        %1520 = vmatmul.mubr.f32.gmra.mrb[0].mxu0 %v1451
        %v1521 = vpop.f32.mrb[0].mxu0
        %v1522 = vadd.f32 0.0, %v1521
        %v1523 = vpop.f32.mrb[0].mxu0
        %1524 = vdwg.mxu0
        %v1525 = vsel %vm667, %v1522, -inf
        %1526 = vmax.xlane.f32.xlu0 %v1525
        %v1527 = vpop.xlane.xlu0 %1526
        %v1528 = vsub.f32 %v1522, %v1527
        %v1529 = vmul.f32 %v1528, 1.442695
        %v1530 = vpow.pop %v1529
        %v1531 = vsel %vm667, %v1530, 0.0
        %1532 = vadd.xlane.f32.xlu0 %v1531
        %v1533 = vpop.xlane.xlu0 %1532
        %v1534 = vrcp.pop %v1533
        %v1535 = vmul.f32 %v1530, %v1534
        %s1536 = scalar_lea.vmem %s362, 40 [#allocation13]
        %1537 = vst.msk [vmem:[%s1536] sm:$0xff] %vm667, %v1535
        %1538 = vrot.lane.b32.xlu0 %v587, 108
        %v1539 = vpop.permute.xlu0 %1538
        %v1542 = vsel %vm667, %v1535, 0
        %1544 = vmatprep.subr.mxu0 0.0
        %1545 = vmatpush1.msra.mxu0 %v1539
        %1546 = vmatprep.subr.mxu0 0.0
        %1547 = vmatpush1.msra.mxu0 0.0
        %1548 = vmatprep.subr.mxu0 0.0
        %1549 = vmatpush1.msra.mxu0 0.0
        %1550 = vmatprep.subr.mxu0 0.0
        %1551 = vmatpush1.msra.mxu0 0.0
        %1552 = vmatprep.subr.mxu0 0.0
        %1553 = vmatpush1.msra.mxu0 0.0
        %1554 = vmatprep.subr.mxu0 0.0
        %1555 = vmatpush1.msra.mxu0 0.0
        %1556 = vmatprep.subr.mxu0 0.0
        %1557 = vmatpush1.msra.mxu0 0.0
        %1558 = vmatprep.subr.mxu0 0.0
        %1559 = vmatpush1.msra.mxu0 0.0
        %1560 = vmatprep.subr.mxu0 0.0
        %1561 = vmatpush1.msra.mxu0 0.0
        %1562 = vmatprep.subr.mxu0 0.0
        %1563 = vmatpush1.msra.mxu0 0.0
        %1564 = vmatprep.subr.mxu0 0.0
        %1565 = vmatpush1.msra.mxu0 0.0
        %1566 = vmatprep.subr.mxu0 0.0
        %1567 = vmatpush1.msra.mxu0 0.0
        %1568 = vmatprep.subr.mxu0 0.0
        %1569 = vmatpush1.msra.mxu0 0.0
        %1570 = vmatprep.subr.mxu0 0.0
        %1571 = vmatpush1.msra.mxu0 0.0
        %1572 = vmatprep.subr.mxu0 0.0
        %1573 = vmatpush1.msra.mxu0 0.0
        %1574 = vmatprep.subr.mxu0 0.0
        %1575 = vmatpush1.msra.mxu0 0.0
        %1576 = vmatprep.subr.mxu0 0.0
        %1577 = vmatpush1.msra.mxu0 0.0
        %1578 = vmatprep.subr.mxu0 0.0
        %1579 = vmatpush1.msra.mxu0 0.0
        %1580 = vmatprep.subr.mxu0 0.0
        %1581 = vmatpush1.msra.mxu0 0.0
        %1582 = vmatprep.subr.mxu0 0.0
        %1583 = vmatpush1.msra.mxu0 0.0
        %1584 = vmatprep.subr.mxu0 0.0
        %1585 = vmatpush1.msra.mxu0 0.0
        %1586 = vmatprep.subr.mxu0 0.0
        %1587 = vmatpush1.msra.mxu0 0.0
        %1588 = vmatprep.subr.mxu0 0.0
        %1589 = vmatpush1.msra.mxu0 0.0
        %1590 = vmatprep.subr.mxu0 0.0
        %1591 = vmatpush1.msra.mxu0 0.0
        %1592 = vmatprep.subr.mxu0 0.0
        %1593 = vmatpush1.msra.mxu0 0.0
        %1594 = vmatprep.subr.mxu0 0.0
        %1595 = vmatpush1.msra.mxu0 0.0
        %1596 = vmatprep.subr.mxu0 0.0
        %1597 = vmatpush1.msra.mxu0 0.0
        %1598 = vmatprep.subr.mxu0 0.0
        %1599 = vmatpush1.msra.mxu0 0.0
        %1600 = vmatprep.subr.mxu0 0.0
        %1601 = vmatpush1.msra.mxu0 0.0
        %1602 = vmatprep.subr.mxu0 0.0
        %1603 = vmatpush1.msra.mxu0 0.0
        %1604 = vmatprep.subr.mxu0 0.0
        %1605 = vmatpush1.msra.mxu0 0.0
        %1606 = vmatprep.subr.mxu0 0.0
        %1607 = vmatpush1.msra.mxu0 0.0
        %1608 = vmatprep.mubr.f32.mxu0 0.0
        %1609 = vmatmul.mubr.f32.gmra.mrb[0].mxu0 %v1542
        %v1610 = vpop.f32.mrb[0].mxu0
        %v1611 = vadd.f32 0.0, %v1610
        %v1612 = vpop.f32.mrb[0].mxu0
        %1613 = vdwg.mxu0
        %1615 = vrot.lane.b32.xlu0 %v1611, 20
        %v1616 = vpop.permute.xlu0 %1615
        %vm1618 = vcmask 195744
        %1619 = vst.msk [vmem:[#allocation2] sm:$0xff] %vm1618, %v1616
        %1620 = vrot.lane.b32.xlu0 %v439, 104
        %v1621 = vpop.permute.xlu0 %1620
        %1622 = vrot.lane.b32.xlu0 %v513, 104
        %v1623 = vpop.permute.xlu0 %1622
        %v1624 = vsel %vm590, %v1621, 0
        %v1626 = vsel %vm590, %v1623, 0
        %1628 = vmatprep.subr.mxu0 0.0
        %1629 = vmatpush1.xpose.msra.mxu0 %v1626
        %1630 = vmatprep.subr.mxu0 0.0
        %1631 = vmatpush1.xpose.msra.mxu0 0.0
        %1632 = vmatprep.subr.mxu0 0.0
        %1633 = vmatpush1.xpose.msra.mxu0 0.0
        %1634 = vmatprep.subr.mxu0 0.0
        %1635 = vmatpush1.xpose.msra.mxu0 0.0
        %1636 = vmatprep.subr.mxu0 0.0
        %1637 = vmatpush1.xpose.msra.mxu0 0.0
        %1638 = vmatprep.subr.mxu0 0.0
        %1639 = vmatpush1.xpose.msra.mxu0 0.0
        %1640 = vmatprep.subr.mxu0 0.0
        %1641 = vmatpush1.xpose.msra.mxu0 0.0
        %1642 = vmatprep.subr.mxu0 0.0
        %1643 = vmatpush1.xpose.msra.mxu0 0.0
        %1644 = vmatprep.subr.mxu0 0.0
        %1645 = vmatpush1.xpose.msra.mxu0 0.0
        %1646 = vmatprep.subr.mxu0 0.0
        %1647 = vmatpush1.xpose.msra.mxu0 0.0
        %1648 = vmatprep.subr.mxu0 0.0
        %1649 = vmatpush1.xpose.msra.mxu0 0.0
        %1650 = vmatprep.subr.mxu0 0.0
        %1651 = vmatpush1.xpose.msra.mxu0 0.0
        %1652 = vmatprep.subr.mxu0 0.0
        %1653 = vmatpush1.xpose.msra.mxu0 0.0
        %1654 = vmatprep.subr.mxu0 0.0
        %1655 = vmatpush1.xpose.msra.mxu0 0.0
        %1656 = vmatprep.subr.mxu0 0.0
        %1657 = vmatpush1.xpose.msra.mxu0 0.0
        %1658 = vmatprep.subr.mxu0 0.0
        %1659 = vmatpush1.xpose.msra.mxu0 0.0
        %1660 = vmatprep.subr.mxu0 0.0
        %1661 = vmatpush1.xpose.msra.mxu0 0.0
        %1662 = vmatprep.subr.mxu0 0.0
        %1663 = vmatpush1.xpose.msra.mxu0 0.0
        %1664 = vmatprep.subr.mxu0 0.0
        %1665 = vmatpush1.xpose.msra.mxu0 0.0
        %1666 = vmatprep.subr.mxu0 0.0
        %1667 = vmatpush1.xpose.msra.mxu0 0.0
        %1668 = vmatprep.subr.mxu0 0.0
        %1669 = vmatpush1.xpose.msra.mxu0 0.0
        %1670 = vmatprep.subr.mxu0 0.0
        %1671 = vmatpush1.xpose.msra.mxu0 0.0
        %1672 = vmatprep.subr.mxu0 0.0
        %1673 = vmatpush1.xpose.msra.mxu0 0.0
        %1674 = vmatprep.subr.mxu0 0.0
        %1675 = vmatpush1.xpose.msra.mxu0 0.0
        %1676 = vmatprep.subr.mxu0 0.0
        %1677 = vmatpush1.xpose.msra.mxu0 0.0
        %1678 = vmatprep.subr.mxu0 0.0
        %1679 = vmatpush1.xpose.msra.mxu0 0.0
        %1680 = vmatprep.subr.mxu0 0.0
        %1681 = vmatpush1.xpose.msra.mxu0 0.0
        %1682 = vmatprep.subr.mxu0 0.0
        %1683 = vmatpush1.xpose.msra.mxu0 0.0
        %1684 = vmatprep.subr.mxu0 0.0
        %1685 = vmatpush1.xpose.msra.mxu0 0.0
        %1686 = vmatprep.subr.mxu0 0.0
        %1687 = vmatpush1.xpose.msra.mxu0 0.0
        %1688 = vmatprep.subr.mxu0 0.0
        %1689 = vmatpush1.xpose.msra.mxu0 0.0
        %1690 = vmatprep.subr.mxu0 0.0
        %1691 = vmatpush1.xpose.msra.mxu0 0.0
        %1692 = vmatprep.mubr.f32.mxu0 0.0
        %1693 = vmatmul.mubr.f32.gmra.mrb[0].mxu0 %v1624
        %v1694 = vpop.f32.mrb[0].mxu0
        %v1695 = vadd.f32 0.0, %v1694
        %v1696 = vpop.f32.mrb[0].mxu0
        %1697 = vdwg.mxu0
        %v1698 = vsel %vm667, %v1695, -inf
        %1699 = vmax.xlane.f32.xlu0 %v1698
        %v1700 = vpop.xlane.xlu0 %1699
        %v1701 = vsub.f32 %v1695, %v1700
        %v1702 = vmul.f32 %v1701, 1.442695
        %v1703 = vpow.pop %v1702
        %v1704 = vsel %vm667, %v1703, 0.0
        %1705 = vadd.xlane.f32.xlu0 %v1704
        %v1706 = vpop.xlane.xlu0 %1705
        %v1707 = vrcp.pop %v1706
        %v1708 = vmul.f32 %v1703, %v1707
        %s1709 = scalar_lea.vmem %s362, 48 [#allocation13]
        %1710 = vst.msk [vmem:[%s1709] sm:$0xff] %vm667, %v1708
        %1711 = vrot.lane.b32.xlu0 %v587, 104
        %v1712 = vpop.permute.xlu0 %1711
        %v1715 = vsel %vm667, %v1708, 0
        %1717 = vmatprep.subr.mxu0 0.0
        %1718 = vmatpush1.msra.mxu0 %v1712
        %1719 = vmatprep.subr.mxu0 0.0
        %1720 = vmatpush1.msra.mxu0 0.0
        %1721 = vmatprep.subr.mxu0 0.0
        %1722 = vmatpush1.msra.mxu0 0.0
        %1723 = vmatprep.subr.mxu0 0.0
        %1724 = vmatpush1.msra.mxu0 0.0
        %1725 = vmatprep.subr.mxu0 0.0
        %1726 = vmatpush1.msra.mxu0 0.0
        %1727 = vmatprep.subr.mxu0 0.0
        %1728 = vmatpush1.msra.mxu0 0.0
        %1729 = vmatprep.subr.mxu0 0.0
        %1730 = vmatpush1.msra.mxu0 0.0
        %1731 = vmatprep.subr.mxu0 0.0
        %1732 = vmatpush1.msra.mxu0 0.0
        %1733 = vmatprep.subr.mxu0 0.0
        %1734 = vmatpush1.msra.mxu0 0.0
        %1735 = vmatprep.subr.mxu0 0.0
        %1736 = vmatpush1.msra.mxu0 0.0
        %1737 = vmatprep.subr.mxu0 0.0
        %1738 = vmatpush1.msra.mxu0 0.0
        %1739 = vmatprep.subr.mxu0 0.0
        %1740 = vmatpush1.msra.mxu0 0.0
        %1741 = vmatprep.subr.mxu0 0.0
        %1742 = vmatpush1.msra.mxu0 0.0
        %1743 = vmatprep.subr.mxu0 0.0
        %1744 = vmatpush1.msra.mxu0 0.0
        %1745 = vmatprep.subr.mxu0 0.0
        %1746 = vmatpush1.msra.mxu0 0.0
        %1747 = vmatprep.subr.mxu0 0.0
        %1748 = vmatpush1.msra.mxu0 0.0
        %1749 = vmatprep.subr.mxu0 0.0
        %1750 = vmatpush1.msra.mxu0 0.0
        %1751 = vmatprep.subr.mxu0 0.0
        %1752 = vmatpush1.msra.mxu0 0.0
        %1753 = vmatprep.subr.mxu0 0.0
        %1754 = vmatpush1.msra.mxu0 0.0
        %1755 = vmatprep.subr.mxu0 0.0
        %1756 = vmatpush1.msra.mxu0 0.0
        %1757 = vmatprep.subr.mxu0 0.0
        %1758 = vmatpush1.msra.mxu0 0.0
        %1759 = vmatprep.subr.mxu0 0.0
        %1760 = vmatpush1.msra.mxu0 0.0
        %1761 = vmatprep.subr.mxu0 0.0
        %1762 = vmatpush1.msra.mxu0 0.0
        %1763 = vmatprep.subr.mxu0 0.0
        %1764 = vmatpush1.msra.mxu0 0.0
        %1765 = vmatprep.subr.mxu0 0.0
        %1766 = vmatpush1.msra.mxu0 0.0
        %1767 = vmatprep.subr.mxu0 0.0
        %1768 = vmatpush1.msra.mxu0 0.0
        %1769 = vmatprep.subr.mxu0 0.0
        %1770 = vmatpush1.msra.mxu0 0.0
        %1771 = vmatprep.subr.mxu0 0.0
        %1772 = vmatpush1.msra.mxu0 0.0
        %1773 = vmatprep.subr.mxu0 0.0
        %1774 = vmatpush1.msra.mxu0 0.0
        %1775 = vmatprep.subr.mxu0 0.0
        %1776 = vmatpush1.msra.mxu0 0.0
        %1777 = vmatprep.subr.mxu0 0.0
        %1778 = vmatpush1.msra.mxu0 0.0
        %1779 = vmatprep.subr.mxu0 0.0
        %1780 = vmatpush1.msra.mxu0 0.0
        %1781 = vmatprep.mubr.f32.mxu0 0.0
        %1782 = vmatmul.mubr.f32.gmra.mrb[0].mxu0 %v1715
        %v1783 = vpop.f32.mrb[0].mxu0
        %v1784 = vadd.f32 0.0, %v1783
        %v1785 = vpop.f32.mrb[0].mxu0
        %1786 = vdwg.mxu0
        %1788 = vrot.lane.b32.xlu0 %v1784, 24
        %v1789 = vpop.permute.xlu0 %1788
        %vm1791 = vcmask 228544
        %1792 = vst.msk [vmem:[#allocation2] sm:$0xff] %vm1791, %v1789
        %1793 = vrot.lane.b32.xlu0 %v439, 100
        %v1794 = vpop.permute.xlu0 %1793
        %1795 = vrot.lane.b32.xlu0 %v513, 100
        %v1796 = vpop.permute.xlu0 %1795
        %v1797 = vsel %vm590, %v1794, 0
        %v1799 = vsel %vm590, %v1796, 0
        %1801 = vmatprep.subr.mxu0 0.0
        %1802 = vmatpush1.xpose.msra.mxu0 %v1799
        %1803 = vmatprep.subr.mxu0 0.0
        %1804 = vmatpush1.xpose.msra.mxu0 0.0
        %1805 = vmatprep.subr.mxu0 0.0
        %1806 = vmatpush1.xpose.msra.mxu0 0.0
        %1807 = vmatprep.subr.mxu0 0.0
        %1808 = vmatpush1.xpose.msra.mxu0 0.0
        %1809 = vmatprep.subr.mxu0 0.0
        %1810 = vmatpush1.xpose.msra.mxu0 0.0
        %1811 = vmatprep.subr.mxu0 0.0
        %1812 = vmatpush1.xpose.msra.mxu0 0.0
        %1813 = vmatprep.subr.mxu0 0.0
        %1814 = vmatpush1.xpose.msra.mxu0 0.0
        %1815 = vmatprep.subr.mxu0 0.0
        %1816 = vmatpush1.xpose.msra.mxu0 0.0
        %1817 = vmatprep.subr.mxu0 0.0
        %1818 = vmatpush1.xpose.msra.mxu0 0.0
        %1819 = vmatprep.subr.mxu0 0.0
        %1820 = vmatpush1.xpose.msra.mxu0 0.0
        %1821 = vmatprep.subr.mxu0 0.0
        %1822 = vmatpush1.xpose.msra.mxu0 0.0
        %1823 = vmatprep.subr.mxu0 0.0
        %1824 = vmatpush1.xpose.msra.mxu0 0.0
        %1825 = vmatprep.subr.mxu0 0.0
        %1826 = vmatpush1.xpose.msra.mxu0 0.0
        %1827 = vmatprep.subr.mxu0 0.0
        %1828 = vmatpush1.xpose.msra.mxu0 0.0
        %1829 = vmatprep.subr.mxu0 0.0
        %1830 = vmatpush1.xpose.msra.mxu0 0.0
        %1831 = vmatprep.subr.mxu0 0.0
        %1832 = vmatpush1.xpose.msra.mxu0 0.0
        %1833 = vmatprep.subr.mxu0 0.0
        %1834 = vmatpush1.xpose.msra.mxu0 0.0
        %1835 = vmatprep.subr.mxu0 0.0
        %1836 = vmatpush1.xpose.msra.mxu0 0.0
        %1837 = vmatprep.subr.mxu0 0.0
        %1838 = vmatpush1.xpose.msra.mxu0 0.0
        %1839 = vmatprep.subr.mxu0 0.0
        %1840 = vmatpush1.xpose.msra.mxu0 0.0
        %1841 = vmatprep.subr.mxu0 0.0
        %1842 = vmatpush1.xpose.msra.mxu0 0.0
        %1843 = vmatprep.subr.mxu0 0.0
        %1844 = vmatpush1.xpose.msra.mxu0 0.0
        %1845 = vmatprep.subr.mxu0 0.0
        %1846 = vmatpush1.xpose.msra.mxu0 0.0
        %1847 = vmatprep.subr.mxu0 0.0
        %1848 = vmatpush1.xpose.msra.mxu0 0.0
        %1849 = vmatprep.subr.mxu0 0.0
        %1850 = vmatpush1.xpose.msra.mxu0 0.0
        %1851 = vmatprep.subr.mxu0 0.0
        %1852 = vmatpush1.xpose.msra.mxu0 0.0
        %1853 = vmatprep.subr.mxu0 0.0
        %1854 = vmatpush1.xpose.msra.mxu0 0.0
        %1855 = vmatprep.subr.mxu0 0.0
        %1856 = vmatpush1.xpose.msra.mxu0 0.0
        %1857 = vmatprep.subr.mxu0 0.0
        %1858 = vmatpush1.xpose.msra.mxu0 0.0
        %1859 = vmatprep.subr.mxu0 0.0
        %1860 = vmatpush1.xpose.msra.mxu0 0.0
        %1861 = vmatprep.subr.mxu0 0.0
        %1862 = vmatpush1.xpose.msra.mxu0 0.0
        %1863 = vmatprep.subr.mxu0 0.0
        %1864 = vmatpush1.xpose.msra.mxu0 0.0
        %1865 = vmatprep.mubr.f32.mxu0 0.0
        %1866 = vmatmul.mubr.f32.gmra.mrb[0].mxu0 %v1797
        %v1867 = vpop.f32.mrb[0].mxu0
        %v1868 = vadd.f32 0.0, %v1867
        %v1869 = vpop.f32.mrb[0].mxu0
        %1870 = vdwg.mxu0
        %v1871 = vsel %vm667, %v1868, -inf
        %1872 = vmax.xlane.f32.xlu0 %v1871
        %v1873 = vpop.xlane.xlu0 %1872
        %v1874 = vsub.f32 %v1868, %v1873
        %v1875 = vmul.f32 %v1874, 1.442695
        %v1876 = vpow.pop %v1875
        %v1877 = vsel %vm667, %v1876, 0.0
        %1878 = vadd.xlane.f32.xlu0 %v1877
        %v1879 = vpop.xlane.xlu0 %1878
        %v1880 = vrcp.pop %v1879
        %v1881 = vmul.f32 %v1876, %v1880
        %s1882 = scalar_lea.vmem %s362, 56 [#allocation13]
        %1883 = vst.msk [vmem:[%s1882] sm:$0xff] %vm667, %v1881
        %1884 = vrot.lane.b32.xlu0 %v587, 100
        %v1885 = vpop.permute.xlu0 %1884
        %v1888 = vsel %vm667, %v1881, 0
        %1890 = vmatprep.subr.mxu0 0.0
        %1891 = vmatpush1.msra.mxu0 %v1885
        %1892 = vmatprep.subr.mxu0 0.0
        %1893 = vmatpush1.msra.mxu0 0.0
        %1894 = vmatprep.subr.mxu0 0.0
        %1895 = vmatpush1.msra.mxu0 0.0
        %1896 = vmatprep.subr.mxu0 0.0
        %1897 = vmatpush1.msra.mxu0 0.0
        %1898 = vmatprep.subr.mxu0 0.0
        %1899 = vmatpush1.msra.mxu0 0.0
        %1900 = vmatprep.subr.mxu0 0.0
        %1901 = vmatpush1.msra.mxu0 0.0
        %1902 = vmatprep.subr.mxu0 0.0
        %1903 = vmatpush1.msra.mxu0 0.0
        %1904 = vmatprep.subr.mxu0 0.0
        %1905 = vmatpush1.msra.mxu0 0.0
        %1906 = vmatprep.subr.mxu0 0.0
        %1907 = vmatpush1.msra.mxu0 0.0
        %1908 = vmatprep.subr.mxu0 0.0
        %1909 = vmatpush1.msra.mxu0 0.0
        %1910 = vmatprep.subr.mxu0 0.0
        %1911 = vmatpush1.msra.mxu0 0.0
        %1912 = vmatprep.subr.mxu0 0.0
        %1913 = vmatpush1.msra.mxu0 0.0
        %1914 = vmatprep.subr.mxu0 0.0
        %1915 = vmatpush1.msra.mxu0 0.0
        %1916 = vmatprep.subr.mxu0 0.0
        %1917 = vmatpush1.msra.mxu0 0.0
        %1918 = vmatprep.subr.mxu0 0.0
        %1919 = vmatpush1.msra.mxu0 0.0
        %1920 = vmatprep.subr.mxu0 0.0
        %1921 = vmatpush1.msra.mxu0 0.0
        %1922 = vmatprep.subr.mxu0 0.0
        %1923 = vmatpush1.msra.mxu0 0.0
        %1924 = vmatprep.subr.mxu0 0.0
        %1925 = vmatpush1.msra.mxu0 0.0
        %1926 = vmatprep.subr.mxu0 0.0
        %1927 = vmatpush1.msra.mxu0 0.0
        %1928 = vmatprep.subr.mxu0 0.0
        %1929 = vmatpush1.msra.mxu0 0.0
        %1930 = vmatprep.subr.mxu0 0.0
        %1931 = vmatpush1.msra.mxu0 0.0
        %1932 = vmatprep.subr.mxu0 0.0
        %1933 = vmatpush1.msra.mxu0 0.0
        %1934 = vmatprep.subr.mxu0 0.0
        %1935 = vmatpush1.msra.mxu0 0.0
        %1936 = vmatprep.subr.mxu0 0.0
        %1937 = vmatpush1.msra.mxu0 0.0
        %1938 = vmatprep.subr.mxu0 0.0
        %1939 = vmatpush1.msra.mxu0 0.0
        %1940 = vmatprep.subr.mxu0 0.0
        %1941 = vmatpush1.msra.mxu0 0.0
        %1942 = vmatprep.subr.mxu0 0.0
        %1943 = vmatpush1.msra.mxu0 0.0
        %1944 = vmatprep.subr.mxu0 0.0
        %1945 = vmatpush1.msra.mxu0 0.0
        %1946 = vmatprep.subr.mxu0 0.0
        %1947 = vmatpush1.msra.mxu0 0.0
        %1948 = vmatprep.subr.mxu0 0.0
        %1949 = vmatpush1.msra.mxu0 0.0
        %1950 = vmatprep.subr.mxu0 0.0
        %1951 = vmatpush1.msra.mxu0 0.0
        %1952 = vmatprep.subr.mxu0 0.0
        %1953 = vmatpush1.msra.mxu0 0.0
        %1954 = vmatprep.mubr.f32.mxu0 0.0
        %1955 = vmatmul.mubr.f32.gmra.mrb[0].mxu0 %v1888
        %v1956 = vpop.f32.mrb[0].mxu0
        %v1957 = vadd.f32 0.0, %v1956
        %v1958 = vpop.f32.mrb[0].mxu0
        %1959 = vdwg.mxu0
        %1961 = vrot.lane.b32.xlu0 %v1957, 28
        %v1962 = vpop.permute.xlu0 %1961
        %vm1964 = vcmask 261344
        %1965 = vst.msk [vmem:[#allocation2] sm:$0xff] %vm1964, %v1962
        %v1966 = vld [vmem:[#allocation2] sm:$0xff]
        %v1967 = vld [vmem:[#allocation11] sm:$0xff]
        %v1968 = vld [vmem:[#allocation11 + $0x8] sm:$0xff]
        %v1969 = vld [vmem:[#allocation11 + $0x10] sm:$0xff]
        %v1970 = vld [vmem:[#allocation11 + $0x18] sm:$0xff]
        %v1971 = vld [vmem:[%s5] sm:$0x1]
        %v1973 = vlaneseq
        %v1974 = vshrl.u32 %v1973, 7
        %v1975 = vsub.s32 0, %v1974
        %v1976 = vrot.slane %v1971, %v1975
        %v1979 = vsel %vm368, %v1966, 0
        %1981 = vmatprep.subr.mxu0 0.0
        %1982 = vmatpush1.msra.mxu0 %v1967
        %1983 = vmatprep.subr.mxu0 0.0
        %1984 = vmatpush1.msra.mxu0 %v1968
        %1985 = vmatprep.subr.mxu0 0.0
        %1986 = vmatpush1.msra.mxu0 %v1969
        %1987 = vmatprep.subr.mxu0 0.0
        %1988 = vmatpush1.msra.mxu0 %v1970
        %1989 = vmatprep.subr.mxu0 0.0
        %1990 = vmatpush1.msra.mxu0 0.0
        %1991 = vmatprep.subr.mxu0 0.0
        %1992 = vmatpush1.msra.mxu0 0.0
        %1993 = vmatprep.subr.mxu0 0.0
        %1994 = vmatpush1.msra.mxu0 0.0
        %1995 = vmatprep.subr.mxu0 0.0
        %1996 = vmatpush1.msra.mxu0 0.0
        %1997 = vmatprep.subr.mxu0 0.0
        %1998 = vmatpush1.msra.mxu0 0.0
        %1999 = vmatprep.subr.mxu0 0.0
        %2000 = vmatpush1.msra.mxu0 0.0
        %2001 = vmatprep.subr.mxu0 0.0
        %2002 = vmatpush1.msra.mxu0 0.0
        %2003 = vmatprep.subr.mxu0 0.0
        %2004 = vmatpush1.msra.mxu0 0.0
        %2005 = vmatprep.subr.mxu0 0.0
        %2006 = vmatpush1.msra.mxu0 0.0
        %2007 = vmatprep.subr.mxu0 0.0
        %2008 = vmatpush1.msra.mxu0 0.0
        %2009 = vmatprep.subr.mxu0 0.0
        %2010 = vmatpush1.msra.mxu0 0.0
        %2011 = vmatprep.subr.mxu0 0.0
        %2012 = vmatpush1.msra.mxu0 0.0
        %2013 = vmatprep.subr.mxu0 0.0
        %2014 = vmatpush1.msra.mxu0 0.0
        %2015 = vmatprep.subr.mxu0 0.0
        %2016 = vmatpush1.msra.mxu0 0.0
        %2017 = vmatprep.subr.mxu0 0.0
        %2018 = vmatpush1.msra.mxu0 0.0
        %2019 = vmatprep.subr.mxu0 0.0
        %2020 = vmatpush1.msra.mxu0 0.0
        %2021 = vmatprep.subr.mxu0 0.0
        %2022 = vmatpush1.msra.mxu0 0.0
        %2023 = vmatprep.subr.mxu0 0.0
        %2024 = vmatpush1.msra.mxu0 0.0
        %2025 = vmatprep.subr.mxu0 0.0
        %2026 = vmatpush1.msra.mxu0 0.0
        %2027 = vmatprep.subr.mxu0 0.0
        %2028 = vmatpush1.msra.mxu0 0.0
        %2029 = vmatprep.subr.mxu0 0.0
        %2030 = vmatpush1.msra.mxu0 0.0
        %2031 = vmatprep.subr.mxu0 0.0
        %2032 = vmatpush1.msra.mxu0 0.0
        %2033 = vmatprep.subr.mxu0 0.0
        %2034 = vmatpush1.msra.mxu0 0.0
        %2035 = vmatprep.subr.mxu0 0.0
        %2036 = vmatpush1.msra.mxu0 0.0
        %2037 = vmatprep.subr.mxu0 0.0
        %2038 = vmatpush1.msra.mxu0 0.0
        %2039 = vmatprep.subr.mxu0 0.0
        %2040 = vmatpush1.msra.mxu0 0.0
        %2041 = vmatprep.subr.mxu0 0.0
        %2042 = vmatpush1.msra.mxu0 0.0
        %2043 = vmatprep.subr.mxu0 0.0
        %2044 = vmatpush1.msra.mxu0 0.0
        %2045 = vmatprep.mubr.f32.mxu0 0.0
        %2046 = vmatmul.mubr.f32.gmra.mrb[0].mxu0 %v1979
        %v2047 = vpop.f32.mrb[0].mxu0
        %v2048 = vadd.f32 %v1976, %v2047
        %v2049 = vpop.f32.mrb[0].mxu0
        %2050 = vdwg.mxu0
        %2051 = vst.msk [vmem:[%s355] sm:$0xff] %vm368, %v2048
        %s2052 = sand.u32 %s169, 1
        %s2053 = scalar_lea.sflag [#allocation5], %s2052
        %s2054 = sand.u32 %s169, 1
        %s2055 = smul.addr %s2054, 8
        %s2056 = scalar_lea.vmem [#allocation12], %s2055
        %s2057 = sand.u32 %s195, 1
        %s2058 = scalar_lea.sflag [#allocation14], %s2057
        %s2059 = sand.u32 %s195, 1
        %s2060 = smul.addr %s2059, 64
        %s2061 = scalar_lea.vmem [#allocation13], %s2060
        // Predicated region
        $region65: #{tpu_custom_call.1} parent=43 // pred_check
          %p2062 = pneg %p179
        $region66: #{tpu_custom_call.1} parent=43 // pred_check_branch
          %2064 = sbr.rel (%p2062) target = $region68
        $region67: #{tpu_custom_call.1} parent=43 // pred_region
          %s2066 = ssub.s32 128, 128
          %2067 = vsyncadd %s2053, %s2066
          %s2068 = smul.addr %s30, 128
          %s2069 = scalar_lea.hbm %s6, %s2068
          %s2071 = sshll.u32 %s2056, 4
          %s2072 = int_to_ptr.vmem [resolvable:$true] %s2071
          %2074 = dma.vmem_to_hbm [thread:$0]  %s2072, 128, %s2069, %s2053
        $region68: #{tpu_custom_call.1} parent=43 // pred_fallthru
          _
        // Predicated region
        $region69: #{tpu_custom_call.1} parent=43 // pred_check
          %p2075 = pneg %p205
        $region70: #{tpu_custom_call.1} parent=43 // pred_check_branch
          %2077 = sbr.rel (%p2075) target = $region72
        $region71: #{tpu_custom_call.1} parent=43 // pred_region
          %s2079 = ssub.s32 1024, 1024
          %2080 = vsyncadd %s2058, %s2079
          %s2081 = smul.addr %s30, 8
          %s2082 = smul.addr %s2081, 128
          %s2083 = scalar_lea.hbm %s7, %s2082
          %s2084 = sshll.u32 %s2061, 4
          %s2085 = int_to_ptr.vmem [resolvable:$true] %s2084
          %2090 = dma.vmem_to_hbm [thread:$0]  %s2085, 1024, %s2083, %s2058, 128, 128, 8
        $region72: #{tpu_custom_call.1} parent=43 // pred_fallthru
          _
      $region44: #{tpu_custom_call.1} parent=5 // pred_fallthru
        _
      %p2091 = scmp.le.s32.totalorder 2, %s25
      // Predicated region
      $region73: #{tpu_custom_call.1} parent=5 // pred_check
        %p2092 = pneg %p2091
      $region74: #{tpu_custom_call.1} parent=5 // pred_check_branch
        %2094 = sbr.rel (%p2092) target = $region76
      $region75: #{tpu_custom_call.1} parent=5 // pred_region
        %s2095 = ssub.s32 %s25, 2
        // Predicated region
        $region77: #{tpu_custom_call.1} parent=75 // pred_check
          %p2096 = pneg %p185
        $region78: #{tpu_custom_call.1} parent=75 // pred_check_branch
          %2098 = sbr.rel (%p2096) target = $region80
        $region79: #{tpu_custom_call.1} parent=75 // pred_region
          %s2099 = sand.u32 %s170, 1
          %s2100 = scalar_lea.sflag [#allocation5], %s2099
          %s2101 = sand.u32 %s170, 1
          %s2102 = smul.addr %s2101, 8
          %s2103 = scalar_lea.vmem [#allocation12], %s2102
          %2104 = dma.done %s2100, 128
        $region80: #{tpu_custom_call.1} parent=75 // pred_fallthru
          _
        // Predicated region
        $region81: #{tpu_custom_call.1} parent=75 // pred_check
          %p2105 = pneg %p211
        $region82: #{tpu_custom_call.1} parent=75 // pred_check_branch
          %2107 = sbr.rel (%p2105) target = $region84
        $region83: #{tpu_custom_call.1} parent=75 // pred_region
          %s2108 = sand.u32 %s196, 1
          %s2109 = scalar_lea.sflag [#allocation14], %s2108
          %s2110 = sand.u32 %s196, 1
          %s2111 = smul.addr %s2110, 64
          %s2112 = scalar_lea.vmem [#allocation13], %s2111
          %2113 = dma.done %s2109, 1024
        $region84: #{tpu_custom_call.1} parent=75 // pred_fallthru
          _
      $region76: #{tpu_custom_call.1} parent=5 // pred_fallthru
        _
    $region6: #{tpu_custom_call.1} parent=1 // loop_footer
      %s29 = sadd.s32 1, %s25
    $region7: #{tpu_custom_call.1} parent=1 // loop_footer_branch
      %24 = sbr.rel target = $region3
    $region8: #{tpu_custom_call.1} parent=1 // loop_exit
      _
    %2114 = vsyncpa [#allocation4], 1
    %s2115 = scalar_lea.sflag [#allocation4], 1
    %2116 = vsyncpa %s2115, 1
    %2117 = vsyncpa [#allocation7], 1
    %2118 = vsyncpa [#allocation10], 1
    %2119 = vsyncpa [#allocation5], 1
    %s2120 = scalar_lea.sflag [#allocation5], 1
    %2121 = vsyncpa %s2120, 1
    %2122 = vsyncpa [#allocation14], 1
    %s2123 = scalar_lea.sflag [#allocation14], 1
    %2124 = vsyncpa %s2123, 1

</llo_original>
